<compile_context>
chip_gen: v7x
topology: tpu7x:2x2x1
jax: 0.10.0
libtpu: 0.0.40
codegen_flags: <defaults>
</compile_context>

<pallas_src>
import math

import jax
import jax.numpy as jnp
from jax.experimental import pallas as pl
from jax.experimental.pallas import tpu as pltpu

EPS = 1e-5


def _slab_stats(z):
    # mean / biased variance over the last two axes, per leading (batch) index.
    # Chained single-axis reductions (lane, then sublane); equal-sized groups,
    # so mean-of-means == overall mean.
    mu = jnp.mean(jnp.mean(z, axis=-1, keepdims=True), axis=-2, keepdims=True)
    d = z - mu
    var = jnp.mean(jnp.mean(d * d, axis=-1, keepdims=True), axis=-2, keepdims=True)
    return mu, var


def _gelu_exact(h):
    # nn.GELU() default: exact erf-based GELU (kept in f32).
    return 0.5 * h * (1.0 + jax.lax.erf(h * (1.0 / math.sqrt(2.0))))


def perceiver_kernel(
    x_ref, kv_ref,
    g1q_ref, b1q_ref, g1kv_ref, b1kv_ref, g2_ref, b2_ref,
    wq_ref, bq_ref, wkv_ref, bkv_ref,
    ow_ref, w1_ref, fb1_ref, w2_ref, bsum_ref,
    y_ref,
):
    cdt = wq_ref.dtype                       # MXU operand dtype (bf16 or f32)
    f32 = jnp.float32

    x = x_ref[...].astype(f32)               # (BT, Tq,  D)
    kv = kv_ref[...].astype(f32)             # (BT, Tkv, D)
    BT, Tq, D = x.shape
    Tkv = kv.shape[1]

    # ---- LayerNorm statistics; x's stats are shared by norm1q and norm2 ----
    mu_x, var_x = _slab_stats(x)
    xhat = (x - mu_x) * jax.lax.rsqrt(var_x + EPS)           # (BT, Tq, D)
    mu_kv, var_kv = _slab_stats(kv)
    kvhat = (kv - mu_kv) * jax.lax.rsqrt(var_kv + EPS)       # (BT, Tkv, D)

    xn = xhat * g1q_ref[...] + b1q_ref[...]                  # norm1q(x)
    x2n = xhat * g2_ref[...] + b2_ref[...]                   # norm2(x)  (reused stats)
    kvn = kvhat * g1kv_ref[...] + b1kv_ref[...]              # norm1kv(kv)

    # ---- flatten tokens across the batch tile for the per-token projections ----
    xn2 = xn.reshape(BT * Tq, D).astype(cdt)
    x2n2 = x2n.reshape(BT * Tq, D).astype(cdt)
    kvn2 = kvn.reshape(BT * Tkv, D).astype(cdt)

    # fused (q_projection ∘ in_proj_q ∘ 1/sqrt(D)): one matmul.
    q2 = jnp.dot(xn2, wq_ref[...], preferred_element_type=f32) + bq_ref[...]
    # fused (k_projection ∘ in_proj_k | v_projection ∘ in_proj_v): ONE matmul
    # over the concatenated (D, 2D) weight -> lane-dense 2D-wide output.
    kvp = jnp.dot(kvn2, wkv_ref[...], preferred_element_type=f32) + bkv_ref[...]

    # ---- attention (num_heads = 1): only this part stays per-batch ----
    q3 = q2.reshape(BT, Tq, D).astype(cdt)
    kvp3 = kvp.reshape(BT, Tkv, 2 * D).astype(cdt)
    k3 = kvp3[..., :D]                        # lane-aligned static slices (offset D%128==0)
    v3 = kvp3[..., D:]

    scores = jnp.einsum("bqd,bkd->bqk", q3, k3,
                        preferred_element_type=f32)          # (BT, Tq, Tkv), scale folded in
    scores = scores - jnp.max(scores, axis=-1, keepdims=True)
    p = jnp.exp(scores)
    p = p * pl.reciprocal(jnp.sum(p, axis=-1, keepdims=True), approx=True)

    ctx = jnp.einsum("bqk,bkd->bqd", p.astype(cdt), v3,
                     preferred_element_type=f32)             # (BT, Tq, D)
    ctx2 = ctx.reshape(BT * Tq, D).astype(cdt)
    attn_out = jnp.dot(ctx2, ow_ref[...], preferred_element_type=f32)   # bias folded into bsum

    # ---- feed-forward branch (f32 elementwise; bf16/f32 MXU operands) ----
    # At production H / Tkv (D=1024, H=2048, Tkv=1764), tile the ff weights and
    # the kv sequence over an extra "arbitrary" grid axis (or pltpu.emit_pipeline)
    # to bound VMEM residency on v7x; unnecessary at these shapes.
    h = jnp.dot(x2n2, w1_ref[...], preferred_element_type=f32) + fb1_ref[...]
    h = _gelu_exact(h)
    f = jnp.dot(h.astype(cdt), w2_ref[...], preferred_element_type=f32)  # bias folded into bsum

    # ---- residual sum (+ pre-summed out_proj/ff biases), lane-dense store ----
    y = x.reshape(BT * Tq, D) + attn_out + f + bsum_ref[...]
    y_ref[...] = y.reshape(BT, Tq, D).astype(y_ref.dtype)


def perceiver_layer(x, kv, params, *, b_tile=8, mxu_dtype=jnp.bfloat16,
                    vmem_limit_bytes=48 * 1024 * 1024):
    """Pallas forward for PerceiverLayer.

    mxu_dtype is the matmul-operand dtype (bf16 recommended on v6e/v7x; pass
    jnp.float32 for exact-math checking).  Output is always f32.
    """
    B, Tq, D = x.shape
    _, Tkv, _ = kv.shape
    H = params["ff_w1"].shape[0]
    f32 = jnp.float32
    hp = jax.lax.Precision.HIGHEST

    # ---------- one-time algebraic weight fusion (outside the kernel) ----------
    in_w = params["in_w"].astype(f32)                 # (3D, D)
    in_b = params["in_b"].reshape(1, 3 * D).astype(f32)
    w_in_q, w_in_k, w_in_v = in_w[0:D], in_w[D:2 * D], in_w[2 * D:3 * D]
    b_in_q, b_in_k, b_in_v = in_b[:, 0:D], in_b[:, D:2 * D], in_b[:, 2 * D:3 * D]

    scale = 1.0 / math.sqrt(D)                        # num_heads=1 -> head_dim == D

    # nn.Linear: y = x @ W.T + b.  Compose the two linears per path and
    # transpose once so the kernel runs a plain `tokens @ W` (lane-dense N).
    wq_t = (scale * jnp.dot(w_in_q, params["wq"], precision=hp)).T
    bq_e = scale * (jnp.dot(params["bq"].reshape(1, D), w_in_q.T, precision=hp) + b_in_q)
    wk_t = jnp.dot(w_in_k, params["wk"], precision=hp).T
    bk_e = jnp.dot(params["bk"].reshape(1, D), w_in_k.T, precision=hp) + b_in_k
    wv_t = jnp.dot(w_in_v, params["wv"], precision=hp).T
    bv_e = jnp.dot(params["bv"].reshape(1, D), w_in_v.T, precision=hp) + b_in_v

    # k/v share the same input -> one concatenated (D, 2D) weight / (1, 2D) bias.
    wkv_t = jnp.concatenate([wk_t, wv_t], axis=1)
    bkv_e = jnp.concatenate([bk_e, bv_e], axis=1)
    # out_proj bias + ff second-layer bias both land directly in the residual sum.
    bsum = params["out_b"].reshape(1, D).astype(f32) + params["ff_b2"].reshape(1, D).astype(f32)

    weights = [
        params["g1q"].astype(f32), params["b1q"].astype(f32),
        params["g1kv"].astype(f32), params["b1kv"].astype(f32),
        params["g2"].astype(f32), params["b2"].astype(f32),
        wq_t.astype(mxu_dtype), bq_e.astype(f32),
        wkv_t.astype(mxu_dtype), bkv_e.astype(f32),
        params["out_w"].T.astype(mxu_dtype),
        params["ff_w1"].T.astype(mxu_dtype), params["ff_b1"].reshape(1, H).astype(f32),
        params["ff_w2"].T.astype(mxu_dtype),
        bsum,
    ]

    # ---------- batch-tile the grid ----------
    bt = max(1, min(b_tile, B))
    Bp = ((B + bt - 1) // bt) * bt
    if Bp != B:                                       # pad batch to a tile multiple
        x = jnp.concatenate([x, jnp.zeros((Bp - B, Tq, D), x.dtype)], axis=0)
        kv = jnp.concatenate([kv, jnp.zeros((Bp - B, Tkv, D), kv.dtype)], axis=0)

    def wspec(w):
        # full-array weight block (constant index_map -> no re-fetch across steps).
        # NOTE: at production sizes (D=1024, H=2048) single-buffer these
        # (pipeline_mode=pl.Buffered(1)) / tile H so the weight residency fits
        # v7x's 64 MiB VMEM; at these shapes the full set is <1 MiB.
        return pl.BlockSpec(w.shape, lambda b: (0,) * w.ndim)

    in_specs = [
        pl.BlockSpec((bt, Tq, D), lambda b: (b, 0, 0)),
        pl.BlockSpec((bt, Tkv, D), lambda b: (b, 0, 0)),
    ] + [wspec(w) for w in weights]

    y = pl.pallas_call(
        perceiver_kernel,
        out_shape=jax.ShapeDtypeStruct((Bp, Tq, D), jnp.float32),
        grid_spec=pltpu.PrefetchScalarGridSpec(
            num_scalar_prefetch=0,
            grid=(Bp // bt,),
            in_specs=in_specs,
            out_specs=pl.BlockSpec((bt, Tq, D), lambda b: (b, 0, 0)),
        ),
        compiler_params=pltpu.CompilerParams(
            dimension_semantics=("parallel",),        # 2x TC sharding on v7x
            vmem_limit_bytes=vmem_limit_bytes,
        ),
    )(x.astype(f32), kv.astype(f32), *weights)
    return y[:B]


# ------------------------- pure-JAX reference (for checking) -----------------
def reference_forward(x, kv, p):
    def ln(z, g, b):
        mu = jnp.mean(z, axis=(-2, -1), keepdims=True)
        var = jnp.mean((z - mu) ** 2, axis=(-2, -1), keepdims=True)
        return (z - mu) / jnp.sqrt(var + EPS) * g + b

    D = x.shape[-1]
    xn = ln(x, p["g1q"], p["b1q"])
    kvn = ln(kv, p["g1kv"], p["b1kv"])
    q = xn @ p["wq"].T + p["bq"]
    k = kvn @ p["wk"].T + p["bk"]
    v = kvn @ p["wv"].T + p["bv"]
    q2 = q @ p["in_w"][:D].T + p["in_b"][:, :D]
    k2 = k @ p["in_w"][D:2 * D].T + p["in_b"][:, D:2 * D]
    v2 = v @ p["in_w"][2 * D:].T + p["in_b"][:, 2 * D:]
    scores = (q2 / math.sqrt(D)) @ jnp.swapaxes(k2, -1, -2)
    pw = jax.nn.softmax(scores, axis=-1)
    attn = pw @ v2
    attn_out = attn @ p["out_w"].T + p["out_b"]
    x2n = ln(x, p["g2"], p["b2"])
    h = x2n @ p["ff_w1"].T + p["ff_b1"]
    h = 0.5 * h * (1.0 + jax.lax.erf(h / math.sqrt(2.0)))
    f = h @ p["ff_w2"].T + p["ff_b2"]
    return x + attn_out + f


if __name__ == "__main__":
    # Small shapes consistent with the module (extra_tokens=2), with lane-dense
    # d_model / hidden (multiples of 128).
    B, D, H, Tkv, Tq = 5, 128, 256, 16, 2

    key = jax.random.PRNGKey(0)
    ks = jax.random.split(key, 24)
    n = lambda i, shape, s=0.05: s * jax.random.normal(ks[i], shape, jnp.float32)

    params = {
        # LayerNorm affine params (normalized_shape = (tokens, d_model))
        "g1q": 1.0 + n(0, (Tq, D), 0.1),   "b1q": n(1, (Tq, D), 0.1),
        "g1kv": 1.0 + n(2, (Tkv, D), 0.1), "b1kv": n(3, (Tkv, D), 0.1),
        "g2": 1.0 + n(4, (Tq, D), 0.1),    "b2": n(5, (Tq, D), 0.1),
        # outer q/k/v nn.Linear (weight is (out, in))
        "wq": n(6, (D, D)),  "bq": n(7, (1, D), 0.01),
        "wk": n(8, (D, D)),  "bk": n(9, (1, D), 0.01),
        "wv": n(10, (D, D)), "bv": n(11, (1, D), 0.01),
        # nn.MultiheadAttention internals
        "in_w": n(12, (3 * D, D)), "in_b": n(13, (1, 3 * D), 0.01),
        "out_w": n(14, (D, D)),    "out_b": n(15, (1, D), 0.01),
        # feed-forward
        "ff_w1": n(16, (H, D)), "ff_b1": n(17, (1, H), 0.01),
        "ff_w2": n(18, (D, H)), "ff_b2": n(19, (1, D), 0.01),
    }

    x = jax.random.normal(ks[20], (B, Tq, D), jnp.float32)
    kv = jax.random.normal(ks[21], (B, Tkv, D), jnp.float32)

    # Accurate f32 reference (force full-precision XLA matmuls).
    with jax.default_matmul_precision("float32"):
        y_ref = jax.block_until_ready(reference_forward(x, kv, params))

    # 1) exact-math variant: validates weight fusion / stat reuse / batch tiling.
    #    (TPU MXU f32 path + EUP approx reciprocal -> modest tolerance.)
    y32 = jax.block_until_ready(
        perceiver_layer(x, kv, params, b_tile=4, mxu_dtype=jnp.float32))
    assert jnp.allclose(y32, y_ref, atol=1e-2, rtol=1e-2), "f32 kernel mismatch"

    # 2) perf default: bf16 MXU operands, f32 accumulate + f32 elementwise math.
    ybf = jax.block_until_ready(
        perceiver_layer(x, kv, params, b_tile=4, mxu_dtype=jnp.bfloat16))
    assert jnp.allclose(ybf, y_ref, atol=3e-2, rtol=3e-2), "bf16 kernel mismatch"

    print("KERNEL_OK")
</pallas_src>

<mosaic_0001>
module attributes {stable_mosaic.version = 11 : i64} {
  func.func @perceiver_kernel(%arg0: i32, %arg1: memref<4x2x128xf32, #tpu.memory_space<vmem>>, %arg2: memref<4x16x128xf32, #tpu.memory_space<vmem>>, %arg3: memref<2x128xf32, #tpu.memory_space<vmem>>, %arg4: memref<2x128xf32, #tpu.memory_space<vmem>>, %arg5: memref<16x128xf32, #tpu.memory_space<vmem>>, %arg6: memref<16x128xf32, #tpu.memory_space<vmem>>, %arg7: memref<2x128xf32, #tpu.memory_space<vmem>>, %arg8: memref<2x128xf32, #tpu.memory_space<vmem>>, %arg9: memref<128x128xf32, #tpu.memory_space<vmem>>, %arg10: memref<1x128xf32, #tpu.memory_space<vmem>>, %arg11: memref<128x256xf32, #tpu.memory_space<vmem>>, %arg12: memref<1x256xf32, #tpu.memory_space<vmem>>, %arg13: memref<128x128xf32, #tpu.memory_space<vmem>>, %arg14: memref<128x256xf32, #tpu.memory_space<vmem>>, %arg15: memref<1x256xf32, #tpu.memory_space<vmem>>, %arg16: memref<256x128xf32, #tpu.memory_space<vmem>>, %arg17: memref<1x128xf32, #tpu.memory_space<vmem>>, %arg18: memref<4x2x128xf32, #tpu.memory_space<vmem>>) attributes {dimension_semantics = [#tpu.dimension_semantics<parallel>], iteration_bounds = array<i64: 2>, scalar_prefetch = 0 : i64, scratch_operands = 0 : i64, tpu.core_type = #tpu.core_type<tc>, window_params = [{transform_indices = @transform_0, window_bounds = array<i64: 4, 2, 128>}, {transform_indices = @transform_1, window_bounds = array<i64: 4, 16, 128>}, {pipeline_mode = #tpu.pipeline_mode<synchronous>, transform_indices = @transform_2, window_bounds = array<i64: 2, 128>}, {pipeline_mode = #tpu.pipeline_mode<synchronous>, transform_indices = @transform_3, window_bounds = array<i64: 2, 128>}, {pipeline_mode = #tpu.pipeline_mode<synchronous>, transform_indices = @transform_4, window_bounds = array<i64: 16, 128>}, {pipeline_mode = #tpu.pipeline_mode<synchronous>, transform_indices = @transform_5, window_bounds = array<i64: 16, 128>}, {pipeline_mode = #tpu.pipeline_mode<synchronous>, transform_indices = @transform_6, window_bounds = array<i64: 2, 128>}, {pipeline_mode = #tpu.pipeline_mode<synchronous>, transform_indices = @transform_7, window_bounds = array<i64: 2, 128>}, {pipeline_mode = #tpu.pipeline_mode<synchronous>, transform_indices = @transform_8, window_bounds = array<i64: 128, 128>}, {pipeline_mode = #tpu.pipeline_mode<synchronous>, transform_indices = @transform_9, window_bounds = array<i64: 1, 128>}, {pipeline_mode = #tpu.pipeline_mode<synchronous>, transform_indices = @transform_10, window_bounds = array<i64: 128, 256>}, {pipeline_mode = #tpu.pipeline_mode<synchronous>, transform_indices = @transform_11, window_bounds = array<i64: 1, 256>}, {pipeline_mode = #tpu.pipeline_mode<synchronous>, transform_indices = @transform_12, window_bounds = array<i64: 128, 128>}, {pipeline_mode = #tpu.pipeline_mode<synchronous>, transform_indices = @transform_13, window_bounds = array<i64: 128, 256>}, {pipeline_mode = #tpu.pipeline_mode<synchronous>, transform_indices = @transform_14, window_bounds = array<i64: 1, 256>}, {pipeline_mode = #tpu.pipeline_mode<synchronous>, transform_indices = @transform_15, window_bounds = array<i64: 256, 128>}, {pipeline_mode = #tpu.pipeline_mode<synchronous>, transform_indices = @transform_16, window_bounds = array<i64: 1, 128>}, {transform_indices = @transform_17, window_bounds = array<i64: 4, 2, 128>}]} {
    %c0 = arith.constant 0 : index
    %c0_0 = arith.constant 0 : index
    %c0_1 = arith.constant 0 : index
    %0 = vector.load %arg1[%c0, %c0_0, %c0_1] : memref<4x2x128xf32, #tpu.memory_space<vmem>>, vector<4x2x128xf32>
    %c0_2 = arith.constant 0 : index
    %c0_3 = arith.constant 0 : index
    %c0_4 = arith.constant 0 : index
    %1 = vector.load %arg2[%c0_2, %c0_3, %c0_4] : memref<4x16x128xf32, #tpu.memory_space<vmem>>, vector<4x16x128xf32>
    %cst = arith.constant dense<0.000000e+00> : vector<4x2xf32>
    %2 = vector.multi_reduction <add>, %0, %cst [2] : vector<4x2x128xf32> to vector<4x2xf32>
    %3 = vector.shape_cast %2 : vector<4x2xf32> to vector<4x2x1xf32>
    %cst_5 = arith.constant 1.280000e+02 : f32
    %4 = vector.broadcast %cst_5 : f32 to vector<4x2x1xf32>
    %5 = arith.divf %3, %4 : vector<4x2x1xf32>
    %cst_6 = arith.constant dense<0.000000e+00> : vector<4x1xf32>
    %6 = vector.multi_reduction <add>, %5, %cst_6 [1] : vector<4x2x1xf32> to vector<4x1xf32>
    %7 = vector.shape_cast %6 : vector<4x1xf32> to vector<4x1x1xf32>
    %cst_7 = arith.constant 2.000000e+00 : f32
    %8 = vector.broadcast %cst_7 : f32 to vector<4x1x1xf32>
    %9 = arith.divf %7, %8 : vector<4x1x1xf32>
    %10 = vector.broadcast %9 : vector<4x1x1xf32> to vector<4x2x128xf32>
    %11 = arith.subf %0, %10 : vector<4x2x128xf32>
    %12 = arith.mulf %11, %11 : vector<4x2x128xf32>
    %cst_8 = arith.constant dense<0.000000e+00> : vector<4x2xf32>
    %13 = vector.multi_reduction <add>, %12, %cst_8 [2] : vector<4x2x128xf32> to vector<4x2xf32>
    %14 = vector.shape_cast %13 : vector<4x2xf32> to vector<4x2x1xf32>
    %cst_9 = arith.constant 1.280000e+02 : f32
    %15 = vector.broadcast %cst_9 : f32 to vector<4x2x1xf32>
    %16 = arith.divf %14, %15 : vector<4x2x1xf32>
    %cst_10 = arith.constant dense<0.000000e+00> : vector<4x1xf32>
    %17 = vector.multi_reduction <add>, %16, %cst_10 [1] : vector<4x2x1xf32> to vector<4x1xf32>
    %18 = vector.shape_cast %17 : vector<4x1xf32> to vector<4x1x1xf32>
    %cst_11 = arith.constant 2.000000e+00 : f32
    %19 = vector.broadcast %cst_11 : f32 to vector<4x1x1xf32>
    %20 = arith.divf %18, %19 : vector<4x1x1xf32>
    %21 = vector.broadcast %9 : vector<4x1x1xf32> to vector<4x2x128xf32>
    %22 = arith.subf %0, %21 : vector<4x2x128xf32>
    %cst_12 = arith.constant 9.99999974E-6 : f32
    %23 = vector.broadcast %cst_12 : f32 to vector<4x1x1xf32>
    %24 = arith.addf %20, %23 : vector<4x1x1xf32>
    %25 = math.rsqrt %24 : vector<4x1x1xf32>
    %26 = vector.broadcast %25 : vector<4x1x1xf32> to vector<4x2x128xf32>
    %27 = arith.mulf %22, %26 : vector<4x2x128xf32>
    %cst_13 = arith.constant dense<0.000000e+00> : vector<4x16xf32>
    %28 = vector.multi_reduction <add>, %1, %cst_13 [2] : vector<4x16x128xf32> to vector<4x16xf32>
    %29 = vector.shape_cast %28 : vector<4x16xf32> to vector<4x16x1xf32>
    %cst_14 = arith.constant 1.280000e+02 : f32
    %30 = vector.broadcast %cst_14 : f32 to vector<4x16x1xf32>
    %31 = arith.divf %29, %30 : vector<4x16x1xf32>
    %cst_15 = arith.constant dense<0.000000e+00> : vector<4x1xf32>
    %32 = vector.multi_reduction <add>, %31, %cst_15 [1] : vector<4x16x1xf32> to vector<4x1xf32>
    %33 = vector.shape_cast %32 : vector<4x1xf32> to vector<4x1x1xf32>
    %cst_16 = arith.constant 1.600000e+01 : f32
    %34 = vector.broadcast %cst_16 : f32 to vector<4x1x1xf32>
    %35 = arith.divf %33, %34 : vector<4x1x1xf32>
    %36 = vector.broadcast %35 : vector<4x1x1xf32> to vector<4x16x128xf32>
    %37 = arith.subf %1, %36 : vector<4x16x128xf32>
    %38 = arith.mulf %37, %37 : vector<4x16x128xf32>
    %cst_17 = arith.constant dense<0.000000e+00> : vector<4x16xf32>
    %39 = vector.multi_reduction <add>, %38, %cst_17 [2] : vector<4x16x128xf32> to vector<4x16xf32>
    %40 = vector.shape_cast %39 : vector<4x16xf32> to vector<4x16x1xf32>
    %cst_18 = arith.constant 1.280000e+02 : f32
    %41 = vector.broadcast %cst_18 : f32 to vector<4x16x1xf32>
    %42 = arith.divf %40, %41 : vector<4x16x1xf32>
    %cst_19 = arith.constant dense<0.000000e+00> : vector<4x1xf32>
    %43 = vector.multi_reduction <add>, %42, %cst_19 [1] : vector<4x16x1xf32> to vector<4x1xf32>
    %44 = vector.shape_cast %43 : vector<4x1xf32> to vector<4x1x1xf32>
    %cst_20 = arith.constant 1.600000e+01 : f32
    %45 = vector.broadcast %cst_20 : f32 to vector<4x1x1xf32>
    %46 = arith.divf %44, %45 : vector<4x1x1xf32>
    %47 = vector.broadcast %35 : vector<4x1x1xf32> to vector<4x16x128xf32>
    %48 = arith.subf %1, %47 : vector<4x16x128xf32>
    %cst_21 = arith.constant 9.99999974E-6 : f32
    %49 = vector.broadcast %cst_21 : f32 to vector<4x1x1xf32>
    %50 = arith.addf %46, %49 : vector<4x1x1xf32>
    %51 = math.rsqrt %50 : vector<4x1x1xf32>
    %52 = vector.broadcast %51 : vector<4x1x1xf32> to vector<4x16x128xf32>
    %53 = arith.mulf %48, %52 : vector<4x16x128xf32>
    %c0_22 = arith.constant 0 : index
    %c0_23 = arith.constant 0 : index
    %54 = vector.load %arg3[%c0_22, %c0_23] : memref<2x128xf32, #tpu.memory_space<vmem>>, vector<2x128xf32>
    %55 = vector.shape_cast %54 : vector<2x128xf32> to vector<1x2x128xf32>
    %56 = vector.broadcast %55 : vector<1x2x128xf32> to vector<4x2x128xf32>
    %57 = arith.mulf %27, %56 : vector<4x2x128xf32>
    %c0_24 = arith.constant 0 : index
    %c0_25 = arith.constant 0 : index
    %58 = vector.load %arg4[%c0_24, %c0_25] : memref<2x128xf32, #tpu.memory_space<vmem>>, vector<2x128xf32>
    %59 = vector.shape_cast %58 : vector<2x128xf32> to vector<1x2x128xf32>
    %60 = vector.broadcast %59 : vector<1x2x128xf32> to vector<4x2x128xf32>
    %61 = arith.addf %57, %60 : vector<4x2x128xf32>
    %c0_26 = arith.constant 0 : index
    %c0_27 = arith.constant 0 : index
    %62 = vector.load %arg7[%c0_26, %c0_27] : memref<2x128xf32, #tpu.memory_space<vmem>>, vector<2x128xf32>
    %63 = vector.shape_cast %62 : vector<2x128xf32> to vector<1x2x128xf32>
    %64 = vector.broadcast %63 : vector<1x2x128xf32> to vector<4x2x128xf32>
    %65 = arith.mulf %27, %64 : vector<4x2x128xf32>
    %c0_28 = arith.constant 0 : index
    %c0_29 = arith.constant 0 : index
    %66 = vector.load %arg8[%c0_28, %c0_29] : memref<2x128xf32, #tpu.memory_space<vmem>>, vector<2x128xf32>
    %67 = vector.shape_cast %66 : vector<2x128xf32> to vector<1x2x128xf32>
    %68 = vector.broadcast %67 : vector<1x2x128xf32> to vector<4x2x128xf32>
    %69 = arith.addf %65, %68 : vector<4x2x128xf32>
    %c0_30 = arith.constant 0 : index
    %c0_31 = arith.constant 0 : index
    %70 = vector.load %arg5[%c0_30, %c0_31] : memref<16x128xf32, #tpu.memory_space<vmem>>, vector<16x128xf32>
    %71 = vector.shape_cast %70 : vector<16x128xf32> to vector<1x16x128xf32>
    %72 = vector.broadcast %71 : vector<1x16x128xf32> to vector<4x16x128xf32>
    %73 = arith.mulf %53, %72 : vector<4x16x128xf32>
    %c0_32 = arith.constant 0 : index
    %c0_33 = arith.constant 0 : index
    %74 = vector.load %arg6[%c0_32, %c0_33] : memref<16x128xf32, #tpu.memory_space<vmem>>, vector<16x128xf32>
    %75 = vector.shape_cast %74 : vector<16x128xf32> to vector<1x16x128xf32>
    %76 = vector.broadcast %75 : vector<1x16x128xf32> to vector<4x16x128xf32>
    %77 = arith.addf %73, %76 : vector<4x16x128xf32>
    %78 = vector.shape_cast %61 : vector<4x2x128xf32> to vector<8x128xf32>
    %79 = vector.shape_cast %69 : vector<4x2x128xf32> to vector<8x128xf32>
    %80 = vector.shape_cast %77 : vector<4x16x128xf32> to vector<64x128xf32>
    %c0_34 = arith.constant 0 : index
    %c0_35 = arith.constant 0 : index
    %81 = vector.load %arg9[%c0_34, %c0_35] : memref<128x128xf32, #tpu.memory_space<vmem>>, vector<128x128xf32>
    %cst_36 = arith.constant dense<0.000000e+00> : vector<8x128xf32>
    %82 = tpu.matmul %78, %81, %cst_36 {dimension_numbers = #tpu.dot_dimension_numbers<[1], [0], [0], [1], [0, 0, 1, 1], [], []>} : vector<8x128xf32>, vector<128x128xf32>, vector<8x128xf32> -> vector<8x128xf32>
    %c0_37 = arith.constant 0 : index
    %c0_38 = arith.constant 0 : index
    %83 = vector.load %arg10[%c0_37, %c0_38] : memref<1x128xf32, #tpu.memory_space<vmem>>, vector<1x128xf32>
    %84 = vector.broadcast %83 : vector<1x128xf32> to vector<8x128xf32>
    %85 = arith.addf %82, %84 : vector<8x128xf32>
    %c0_39 = arith.constant 0 : index
    %c0_40 = arith.constant 0 : index
    %86 = vector.load %arg11[%c0_39, %c0_40] : memref<128x256xf32, #tpu.memory_space<vmem>>, vector<128x256xf32>
    %cst_41 = arith.constant dense<0.000000e+00> : vector<64x256xf32>
    %87 = tpu.matmul %80, %86, %cst_41 {dimension_numbers = #tpu.dot_dimension_numbers<[1], [0], [0], [1], [0, 0, 1, 1], [], []>} : vector<64x128xf32>, vector<128x256xf32>, vector<64x256xf32> -> vector<64x256xf32>
    %c0_42 = arith.constant 0 : index
    %c0_43 = arith.constant 0 : index
    %88 = vector.load %arg12[%c0_42, %c0_43] : memref<1x256xf32, #tpu.memory_space<vmem>>, vector<1x256xf32>
    %89 = vector.broadcast %88 : vector<1x256xf32> to vector<64x256xf32>
    %90 = arith.addf %87, %89 : vector<64x256xf32>
    %91 = vector.shape_cast %85 : vector<8x128xf32> to vector<4x2x128xf32>
    %92 = vector.shape_cast %90 : vector<64x256xf32> to vector<4x16x256xf32>
    %93 = vector.extract_strided_slice %92 {offsets = [0, 0, 0], sizes = [4, 16, 128], strides = [1, 1, 1]} : vector<4x16x256xf32> to vector<4x16x128xf32>
    %94 = vector.extract_strided_slice %92 {offsets = [0, 0, 128], sizes = [4, 16, 128], strides = [1, 1, 1]} : vector<4x16x256xf32> to vector<4x16x128xf32>
    "tpu.trace_start"() <{level = 10 : i32, message = "bqd,bkd->bqk"}> : () -> ()
    %cst_44 = arith.constant dense<0.000000e+00> : vector<4x2x16xf32>
    %95 = tpu.matmul %91, %93, %cst_44 {dimension_numbers = #tpu.dot_dimension_numbers<[2], [2], [1], [1], [0, 0, 0, 1, 1, 1], [0], [0]>} : vector<4x2x128xf32>, vector<4x16x128xf32>, vector<4x2x16xf32> -> vector<4x2x16xf32>
    "tpu.trace_stop"() : () -> ()
    %cst_45 = arith.constant dense<0xFF800000> : vector<4x2xf32>
    %96 = vector.multi_reduction <maximumf>, %95, %cst_45 [2] : vector<4x2x16xf32> to vector<4x2xf32>
    %97 = vector.shape_cast %96 : vector<4x2xf32> to vector<4x2x1xf32>
    %98 = vector.broadcast %97 : vector<4x2x1xf32> to vector<4x2x16xf32>
    %99 = arith.subf %95, %98 : vector<4x2x16xf32>
    %100 = math.exp %99 : vector<4x2x16xf32>
    %cst_46 = arith.constant dense<0.000000e+00> : vector<4x2xf32>
    %101 = vector.multi_reduction <add>, %100, %cst_46 [2] : vector<4x2x16xf32> to vector<4x2xf32>
    %102 = vector.shape_cast %101 : vector<4x2xf32> to vector<4x2x1xf32>
    %103 = tpu.reciprocal %102 {approx = true} : vector<4x2x1xf32> -> vector<4x2x1xf32>
    %104 = vector.broadcast %103 : vector<4x2x1xf32> to vector<4x2x16xf32>
    %105 = arith.mulf %100, %104 : vector<4x2x16xf32>
    "tpu.trace_start"() <{level = 10 : i32, message = "bqk,bkd->bqd"}> : () -> ()
    %cst_47 = arith.constant dense<0.000000e+00> : vector<4x2x128xf32>
    %106 = tpu.matmul %105, %94, %cst_47 {dimension_numbers = #tpu.dot_dimension_numbers<[2], [1], [1], [2], [0, 0, 0, 1, 1, 2], [0], [0]>} : vector<4x2x16xf32>, vector<4x16x128xf32>, vector<4x2x128xf32> -> vector<4x2x128xf32>
    "tpu.trace_stop"() : () -> ()
    %107 = vector.shape_cast %106 : vector<4x2x128xf32> to vector<8x128xf32>
    %c0_48 = arith.constant 0 : index
    %c0_49 = arith.constant 0 : index
    %108 = vector.load %arg13[%c0_48, %c0_49] : memref<128x128xf32, #tpu.memory_space<vmem>>, vector<128x128xf32>
    %cst_50 = arith.constant dense<0.000000e+00> : vector<8x128xf32>
    %109 = tpu.matmul %107, %108, %cst_50 {dimension_numbers = #tpu.dot_dimension_numbers<[1], [0], [0], [1], [0, 0, 1, 1], [], []>} : vector<8x128xf32>, vector<128x128xf32>, vector<8x128xf32> -> vector<8x128xf32>
    %c0_51 = arith.constant 0 : index
    %c0_52 = arith.constant 0 : index
    %110 = vector.load %arg14[%c0_51, %c0_52] : memref<128x256xf32, #tpu.memory_space<vmem>>, vector<128x256xf32>
    %cst_53 = arith.constant dense<0.000000e+00> : vector<8x256xf32>
    %111 = tpu.matmul %79, %110, %cst_53 {dimension_numbers = #tpu.dot_dimension_numbers<[1], [0], [0], [1], [0, 0, 1, 1], [], []>} : vector<8x128xf32>, vector<128x256xf32>, vector<8x256xf32> -> vector<8x256xf32>
    %c0_54 = arith.constant 0 : index
    %c0_55 = arith.constant 0 : index
    %112 = vector.load %arg15[%c0_54, %c0_55] : memref<1x256xf32, #tpu.memory_space<vmem>>, vector<1x256xf32>
    %113 = vector.broadcast %112 : vector<1x256xf32> to vector<8x256xf32>
    %114 = arith.addf %111, %113 : vector<8x256xf32>
    %cst_56 = arith.constant 5.000000e-01 : f32
    %115 = vector.broadcast %cst_56 : f32 to vector<8x256xf32>
    %116 = arith.mulf %115, %114 : vector<8x256xf32>
    %cst_57 = arith.constant 0.707106769 : f32
    %117 = vector.broadcast %cst_57 : f32 to vector<8x256xf32>
    %118 = arith.mulf %114, %117 : vector<8x256xf32>
    %119 = math.erf %118 : vector<8x256xf32>
    %cst_58 = arith.constant 1.000000e+00 : f32
    %120 = vector.broadcast %cst_58 : f32 to vector<8x256xf32>
    %121 = arith.addf %120, %119 : vector<8x256xf32>
    %122 = arith.mulf %116, %121 : vector<8x256xf32>
    %c0_59 = arith.constant 0 : index
    %c0_60 = arith.constant 0 : index
    %123 = vector.load %arg16[%c0_59, %c0_60] : memref<256x128xf32, #tpu.memory_space<vmem>>, vector<256x128xf32>
    %cst_61 = arith.constant dense<0.000000e+00> : vector<8x128xf32>
    %124 = tpu.matmul %122, %123, %cst_61 {dimension_numbers = #tpu.dot_dimension_numbers<[1], [0], [0], [1], [0, 0, 1, 1], [], []>} : vector<8x256xf32>, vector<256x128xf32>, vector<8x128xf32> -> vector<8x128xf32>
    %125 = vector.shape_cast %0 : vector<4x2x128xf32> to vector<8x128xf32>
    %126 = arith.addf %125, %109 : vector<8x128xf32>
    %127 = arith.addf %126, %124 : vector<8x128xf32>
    %c0_62 = arith.constant 0 : index
    %c0_63 = arith.constant 0 : index
    %128 = vector.load %arg17[%c0_62, %c0_63] : memref<1x128xf32, #tpu.memory_space<vmem>>, vector<1x128xf32>
    %129 = vector.broadcast %128 : vector<1x128xf32> to vector<8x128xf32>
    %130 = arith.addf %127, %129 : vector<8x128xf32>
    %131 = vector.shape_cast %130 : vector<8x128xf32> to vector<4x2x128xf32>
    %c0_64 = arith.constant 0 : index
    %c0_65 = arith.constant 0 : index
    %c0_66 = arith.constant 0 : index
    %132 = vector.load %arg18[%c0_64, %c0_65, %c0_66] : memref<4x2x128xf32, #tpu.memory_space<vmem>>, vector<4x2x128xf32>
    tpu.vector_store %arg18[%c0_64, %c0_65, %c0_66], %131 {strides = array<i32>} : memref<4x2x128xf32, #tpu.memory_space<vmem>>, vector<4x2x128xf32>,
    return
  }
  func.func @transform_0(%arg0: i32) -> (i32, i32, i32) {
    %c0_i32 = arith.constant 0 : i32
    %c0_i32_0 = arith.constant 0 : i32
    %c0_i32_1 = arith.constant 0 : i32
    return %arg0, %c0_i32, %c0_i32_0 : i32, i32, i32
  }
  func.func @transform_1(%arg0: i32) -> (i32, i32, i32) {
    %c0_i32 = arith.constant 0 : i32
    %c0_i32_0 = arith.constant 0 : i32
    %c0_i32_1 = arith.constant 0 : i32
    return %arg0, %c0_i32, %c0_i32_0 : i32, i32, i32
  }
  func.func @transform_2(%arg0: i32) -> (i32, i32) {
    %c0_i32 = arith.constant 0 : i32
    %c0_i32_0 = arith.constant 0 : i32
    %c0_i32_1 = arith.constant 0 : i32
    return %c0_i32, %c0_i32_0 : i32, i32
  }
  func.func @transform_3(%arg0: i32) -> (i32, i32) {
    %c0_i32 = arith.constant 0 : i32
    %c0_i32_0 = arith.constant 0 : i32
    %c0_i32_1 = arith.constant 0 : i32
    return %c0_i32, %c0_i32_0 : i32, i32
  }
  func.func @transform_4(%arg0: i32) -> (i32, i32) {
    %c0_i32 = arith.constant 0 : i32
    %c0_i32_0 = arith.constant 0 : i32
    %c0_i32_1 = arith.constant 0 : i32
    return %c0_i32, %c0_i32_0 : i32, i32
  }
  func.func @transform_5(%arg0: i32) -> (i32, i32) {
    %c0_i32 = arith.constant 0 : i32
    %c0_i32_0 = arith.constant 0 : i32
    %c0_i32_1 = arith.constant 0 : i32
    return %c0_i32, %c0_i32_0 : i32, i32
  }
  func.func @transform_6(%arg0: i32) -> (i32, i32) {
    %c0_i32 = arith.constant 0 : i32
    %c0_i32_0 = arith.constant 0 : i32
    %c0_i32_1 = arith.constant 0 : i32
    return %c0_i32, %c0_i32_0 : i32, i32
  }
  func.func @transform_7(%arg0: i32) -> (i32, i32) {
    %c0_i32 = arith.constant 0 : i32
    %c0_i32_0 = arith.constant 0 : i32
    %c0_i32_1 = arith.constant 0 : i32
    return %c0_i32, %c0_i32_0 : i32, i32
  }
  func.func @transform_8(%arg0: i32) -> (i32, i32) {
    %c0_i32 = arith.constant 0 : i32
    %c0_i32_0 = arith.constant 0 : i32
    %c0_i32_1 = arith.constant 0 : i32
    return %c0_i32, %c0_i32_0 : i32, i32
  }
  func.func @transform_9(%arg0: i32) -> (i32, i32) {
    %c0_i32 = arith.constant 0 : i32
    %c0_i32_0 = arith.constant 0 : i32
    %c0_i32_1 = arith.constant 0 : i32
    return %c0_i32, %c0_i32_0 : i32, i32
  }
  func.func @transform_10(%arg0: i32) -> (i32, i32) {
    %c0_i32 = arith.constant 0 : i32
    %c0_i32_0 = arith.constant 0 : i32
    %c0_i32_1 = arith.constant 0 : i32
    return %c0_i32, %c0_i32_0 : i32, i32
  }
  func.func @transform_11(%arg0: i32) -> (i32, i32) {
    %c0_i32 = arith.constant 0 : i32
    %c0_i32_0 = arith.constant 0 : i32
    %c0_i32_1 = arith.constant 0 : i32
    return %c0_i32, %c0_i32_0 : i32, i32
  }
  func.func @transform_12(%arg0: i32) -> (i32, i32) {
    %c0_i32 = arith.constant 0 : i32
    %c0_i32_0 = arith.constant 0 : i32
    %c0_i32_1 = arith.constant 0 : i32
    return %c0_i32, %c0_i32_0 : i32, i32
  }
  func.func @transform_13(%arg0: i32) -> (i32, i32) {
    %c0_i32 = arith.constant 0 : i32
    %c0_i32_0 = arith.constant 0 : i32
    %c0_i32_1 = arith.constant 0 : i32
    return %c0_i32, %c0_i32_0 : i32, i32
  }
  func.func @transform_14(%arg0: i32) -> (i32, i32) {
    %c0_i32 = arith.constant 0 : i32
    %c0_i32_0 = arith.constant 0 : i32
    %c0_i32_1 = arith.constant 0 : i32
    return %c0_i32, %c0_i32_0 : i32, i32
  }
  func.func @transform_15(%arg0: i32) -> (i32, i32) {
    %c0_i32 = arith.constant 0 : i32
    %c0_i32_0 = arith.constant 0 : i32
    %c0_i32_1 = arith.constant 0 : i32
    return %c0_i32, %c0_i32_0 : i32, i32
  }
  func.func @transform_16(%arg0: i32) -> (i32, i32) {
    %c0_i32 = arith.constant 0 : i32
    %c0_i32_0 = arith.constant 0 : i32
    %c0_i32_1 = arith.constant 0 : i32
    return %c0_i32, %c0_i32_0 : i32, i32
  }
  func.func @transform_17(%arg0: i32) -> (i32, i32, i32) {
    %c0_i32 = arith.constant 0 : i32
    %c0_i32_0 = arith.constant 0 : i32
    %c0_i32_1 = arith.constant 0 : i32
    return %arg0, %c0_i32, %c0_i32_0 : i32, i32, i32
  }
}

</mosaic_0001>

<llo_original>
// kernel: tpu_custom_call.1
$region0: #{tpu_custom_call.1}
  #allocation0 [shape = 'u32[]', space=smem, size = 0x4, offset = 0x4, fixed_abs, tag = 'smem constant byte address 0x4 - core index']
  #allocation1 [shape = 'u32[144,128]{1,0:T(1,128)}', space=vmem, size = 0x12000, scoped, tag = 'internal scratch']
  %s0 = inlined_call_operand.hbm [shape: f32[8,2,128], index: 0, kind: input, shape index: {}]
  %s1 = inlined_call_operand.hbm [shape: f32[8,16,128], index: 1, kind: input, shape index: {}]
  %s2 = inlined_call_operand.vmem [shape: f32[2,128], index: 2, kind: input, shape index: {}]
  %s3 = inlined_call_operand.hbm [shape: f32[2,128], index: 3, kind: input, shape index: {}]
  %s4 = inlined_call_operand.hbm [shape: f32[16,128], index: 4, kind: input, shape index: {}]
  %s5 = inlined_call_operand.vmem [shape: f32[16,128], index: 5, kind: input, shape index: {}]
  %s6 = inlined_call_operand.vmem [shape: f32[2,128], index: 6, kind: input, shape index: {}]
  %s7 = inlined_call_operand.vmem [shape: f32[2,128], index: 7, kind: input, shape index: {}]
  %s8 = inlined_call_operand.hbm [shape: f32[128,128], index: 8, kind: input, shape index: {}]
  %s9 = inlined_call_operand.vmem [shape: f32[1,128], index: 9, kind: input, shape index: {}]
  %s10 = inlined_call_operand.hbm [shape: f32[128,256], index: 10, kind: input, shape index: {}]
  %s11 = inlined_call_operand.vmem [shape: f32[1,256], index: 11, kind: input, shape index: {}]
  %s12 = inlined_call_operand.hbm [shape: f32[128,128], index: 12, kind: input, shape index: {}]
  %s13 = inlined_call_operand.hbm [shape: f32[128,256], index: 13, kind: input, shape index: {}]
  %s14 = inlined_call_operand.vmem [shape: f32[1,256], index: 14, kind: input, shape index: {}]
  %s15 = inlined_call_operand.hbm [shape: f32[256,128], index: 15, kind: input, shape index: {}]
  %s16 = inlined_call_operand.vmem [shape: f32[1,128], index: 16, kind: input, shape index: {}]
  %s17 = inlined_call_operand.hbm [shape: f32[8,2,128], index: 17, kind: output, shape index: {}]
  %s18 = sld [smem:[#allocation0]]
  $region137: #{tpu_custom_call.1} parent=0
    _
  %s20 = ssub.s32 1, %s18
  %s21 = scalar_select 0, %s20, %s18
  $region1: #{tpu_custom_call.1} parent=0
    #allocation2 [shape = 'u8[8192]{0}', space=vmem, size = 0x2000, scoped, tag = 'input window, operand 0']
    #allocation3 [shape = 's32[2]{0}', space=sflag, size = 0x8, scoped, tag = 'scoped memory for tpu_custom_call.1']
    #allocation4 [shape = 's32[2]{0}', space=sflag, size = 0x8, scoped, tag = 'scoped memory for tpu_custom_call.1']
    #allocation5 [shape = 'u8[65536]{0}', space=vmem, size = 0x10000, scoped, tag = 'input window, operand 1']
    #allocation6 [shape = 's32[2]{0}', space=sflag, size = 0x8, scoped, tag = 'scoped memory for tpu_custom_call.1']
    #allocation7 [shape = 'u8[1024]{0}', space=vmem, size = 0x400, scoped, tag = 'input window, operand 3, single buffered']
    #allocation8 [shape = 'u8[8192]{0}', space=vmem, size = 0x2000, scoped, tag = 'input window, operand 4, single buffered']
    #allocation9 [shape = 's32[1]{0}', space=sflag, size = 0x4, scoped, tag = 'scoped memory for tpu_custom_call.1']
    #allocation10 [shape = 'u8[65536]{0}', space=vmem, size = 0x10000, scoped, tag = 'input window, operand 8, single buffered']
    #allocation11 [shape = 'u8[131072]{0}', space=vmem, size = 0x20000, scoped, tag = 'input window, operand 10, single buffered']
    #allocation12 [shape = 's32[1]{0}', space=sflag, size = 0x4, scoped, tag = 'scoped memory for tpu_custom_call.1']
    #allocation13 [shape = 'u8[65536]{0}', space=vmem, size = 0x10000, scoped, tag = 'input window, operand 12, single buffered']
    #allocation14 [shape = 'u8[131072]{0}', space=vmem, size = 0x20000, scoped, tag = 'input window, operand 13, single buffered']
    #allocation15 [shape = 's32[1]{0}', space=sflag, size = 0x4, scoped, tag = 'scoped memory for tpu_custom_call.1']
    #allocation16 [shape = 'u8[131072]{0}', space=vmem, size = 0x20000, scoped, tag = 'input window, operand 15, single buffered']
    #allocation17 [shape = 'u8[8192]{0}', space=vmem, size = 0x2000, scoped, tag = 'output window, operand 0']
    %22 = vsyncpa [#allocation3], 0
    %s23 = scalar_lea.sflag [#allocation3], 1
    %24 = vsyncpa %s23, 0
    %25 = vsyncpa [#allocation6], 0
    %s26 = scalar_lea.sflag [#allocation6], 1
    %27 = vsyncpa %s26, 0
    %28 = vsyncpa [#allocation9], 0
    %29 = vsyncpa [#allocation12], 0
    %30 = vsyncpa [#allocation15], 0
    %31 = vsyncpa [#allocation4], 0
    %s32 = scalar_lea.sflag [#allocation4], 1
    %33 = vsyncpa %s32, 0
    loop: start=0, step=1, limit=4
    $region2: #{tpu_custom_call.1} parent=1 // loop_pre_header
      _
    $region3: #{tpu_custom_call.1} parent=1 // loop_header
      %s35 = sphi 0, %s39
      %p36 = scmp.ge.s32.totalorder %s35, 4
      %s45 = sphi 0, %s47
      %s48 = sphi 0, %s45
      %s49 = sphi 0, %s48
      %s65 = sphi 0, %s49
      %s71 = sphi 0, %s73
      %s74 = sphi 0, %s71
      %s75 = sphi 0, %s74
      %s91 = sphi 0, %s75
      %s95 = sphi 0, %s95
      %s97 = sphi 0, %s95
      %s98 = sphi 0, %s97
      %s112 = sphi 0, %s98
      %s116 = sphi 0, %s116
      %s118 = sphi 0, %s116
      %s119 = sphi 0, %s118
      %s133 = sphi 0, %s119
      %s137 = sphi 0, %s137
      %s139 = sphi 0, %s137
      %s140 = sphi 0, %s139
      %s154 = sphi 0, %s140
      %s158 = sphi 0, %s158
      %s160 = sphi 0, %s158
      %s161 = sphi 0, %s160
      %s175 = sphi 0, %s161
      %s179 = sphi 0, %s179
      %s181 = sphi 0, %s179
      %s182 = sphi 0, %s181
      %s196 = sphi 0, %s182
      %s200 = sphi 0, %s200
      %s202 = sphi 0, %s200
      %s203 = sphi 0, %s202
      %s217 = sphi 0, %s203
      %s221 = sphi 0, %s221
      %s223 = sphi 0, %s221
      %s224 = sphi 0, %s223
      %s238 = sphi 0, %s224
      %s242 = sphi 0, %s242
      %s244 = sphi 0, %s242
      %s245 = sphi 0, %s244
      %s259 = sphi 0, %s245
      %s263 = sphi 0, %s263
      %s265 = sphi 0, %s263
      %s266 = sphi 0, %s265
      %s280 = sphi 0, %s266
      %s284 = sphi 0, %s284
      %s286 = sphi 0, %s284
      %s287 = sphi 0, %s286
      %s301 = sphi 0, %s287
      %s305 = sphi 0, %s305
      %s307 = sphi 0, %s305
      %s308 = sphi 0, %s307
      %s322 = sphi 0, %s308
      %s326 = sphi 0, %s326
      %s328 = sphi 0, %s326
      %s329 = sphi 0, %s328
      %s343 = sphi 0, %s329
      %s347 = sphi 0, %s347
      %s349 = sphi 0, %s347
      %s350 = sphi 0, %s349
      %s364 = sphi 0, %s350
      %s368 = sphi 0, %s368
      %s370 = sphi 0, %s368
      %s371 = sphi 0, %s370
      %s385 = sphi 0, %s371
      %s389 = sphi 0, %s389
      %s391 = sphi 0, %s389
      %s392 = sphi 0, %s391
      %s406 = sphi 0, %s392
      %s412 = sphi 0, %s414
      %s415 = sphi 0, %s412
      %s416 = sphi 0, %s415
      %s432 = sphi 0, %s416
    $region4: #{tpu_custom_call.1} parent=1 // loop_header_branch
      %38 = sbr.rel (%p36) target = $region8
    $region5: #{tpu_custom_call.1} parent=1 // loop_body
      %s40 = ssub.s32 %s35, 1
      %s41 = ssub.s32 %s35, 2
      %s42 = sadd.s32 %s35, 1
      %s43 = ssub.s32 %s35, %s42
      %p44 = scmp.eq.s32.totalorder %s43, 0
      %s46 = sadd.s32 %s45, 1
      %s47 = scalar_select %p44, %s45, %s46
      %p50 = pneg %p44
      %p51 = scmp.eq.s32.totalorder %s35, 1
      %p52 = por %p50, %p51
      %p53 = scmp.ne.s32.totalorder %s45, %s48
      %p54 = scmp.eq.s32.totalorder %s35, 0
      %p55 = por %p53, %p54
      %p56 = scmp.ne.s32.totalorder %s45, %s48
      %p57 = scmp.eq.s32.totalorder %s40, 1
      %p58 = por %p56, %p57
      %p59 = scmp.ne.s32.totalorder %s48, %s49
      %p60 = scmp.eq.s32.totalorder %s40, 0
      %p61 = por %p59, %p60
      %p62 = scmp.ne.s32.totalorder %s48, %s49
      %p63 = scmp.eq.s32.totalorder %s41, 1
      %p64 = por %p62, %p63
      %p66 = scmp.ne.s32.totalorder %s49, %s65
      %p67 = scmp.eq.s32.totalorder %s41, 0
      %p68 = por %p66, %p67
      %s69 = ssub.s32 %s35, %s42
      %p70 = scmp.eq.s32.totalorder %s69, 0
      %s72 = sadd.s32 %s71, 1
      %s73 = scalar_select %p70, %s71, %s72
      %p76 = pneg %p70
      %p77 = scmp.eq.s32.totalorder %s35, 1
      %p78 = por %p76, %p77
      %p79 = scmp.ne.s32.totalorder %s71, %s74
      %p80 = scmp.eq.s32.totalorder %s35, 0
      %p81 = por %p79, %p80
      %p82 = scmp.ne.s32.totalorder %s71, %s74
      %p83 = scmp.eq.s32.totalorder %s40, 1
      %p84 = por %p82, %p83
      %p85 = scmp.ne.s32.totalorder %s74, %s75
      %p86 = scmp.eq.s32.totalorder %s40, 0
      %p87 = por %p85, %p86
      %p88 = scmp.ne.s32.totalorder %s74, %s75
      %p89 = scmp.eq.s32.totalorder %s41, 1
      %p90 = por %p88, %p89
      %p92 = scmp.ne.s32.totalorder %s75, %s91
      %p93 = scmp.eq.s32.totalorder %s41, 0
      %p94 = por %p92, %p93
      %s96 = sadd.s32 %s95, 1
      %p99 = scmp.eq.s32.totalorder %s35, 1
      %p100 = scmp.ne.s32.totalorder %s95, %s97
      %p101 = scmp.eq.s32.totalorder %s35, 0
      %p102 = por %p100, %p101
      %p103 = scmp.ne.s32.totalorder %s95, %s97
      %p104 = scmp.eq.s32.totalorder %s40, 1
      %p105 = por %p103, %p104
      %p106 = scmp.ne.s32.totalorder %s97, %s98
      %p107 = scmp.eq.s32.totalorder %s40, 0
      %p108 = por %p106, %p107
      %p109 = scmp.ne.s32.totalorder %s97, %s98
      %p110 = scmp.eq.s32.totalorder %s41, 1
      %p111 = por %p109, %p110
      %p113 = scmp.ne.s32.totalorder %s98, %s112
      %p114 = scmp.eq.s32.totalorder %s41, 0
      %p115 = por %p113, %p114
      %s117 = sadd.s32 %s116, 1
      %p120 = scmp.eq.s32.totalorder %s35, 1
      %p121 = scmp.ne.s32.totalorder %s116, %s118
      %p122 = scmp.eq.s32.totalorder %s35, 0
      %p123 = por %p121, %p122
      %p124 = scmp.ne.s32.totalorder %s116, %s118
      %p125 = scmp.eq.s32.totalorder %s40, 1
      %p126 = por %p124, %p125
      %p127 = scmp.ne.s32.totalorder %s118, %s119
      %p128 = scmp.eq.s32.totalorder %s40, 0
      %p129 = por %p127, %p128
      %p130 = scmp.ne.s32.totalorder %s118, %s119
      %p131 = scmp.eq.s32.totalorder %s41, 1
      %p132 = por %p130, %p131
      %p134 = scmp.ne.s32.totalorder %s119, %s133
      %p135 = scmp.eq.s32.totalorder %s41, 0
      %p136 = por %p134, %p135
      %s138 = sadd.s32 %s137, 1
      %p141 = scmp.eq.s32.totalorder %s35, 1
      %p142 = scmp.ne.s32.totalorder %s137, %s139
      %p143 = scmp.eq.s32.totalorder %s35, 0
      %p144 = por %p142, %p143
      %p145 = scmp.ne.s32.totalorder %s137, %s139
      %p146 = scmp.eq.s32.totalorder %s40, 1
      %p147 = por %p145, %p146
      %p148 = scmp.ne.s32.totalorder %s139, %s140
      %p149 = scmp.eq.s32.totalorder %s40, 0
      %p150 = por %p148, %p149
      %p151 = scmp.ne.s32.totalorder %s139, %s140
      %p152 = scmp.eq.s32.totalorder %s41, 1
      %p153 = por %p151, %p152
      %p155 = scmp.ne.s32.totalorder %s140, %s154
      %p156 = scmp.eq.s32.totalorder %s41, 0
      %p157 = por %p155, %p156
      %s159 = sadd.s32 %s158, 1
      %p162 = scmp.eq.s32.totalorder %s35, 1
      %p163 = scmp.ne.s32.totalorder %s158, %s160
      %p164 = scmp.eq.s32.totalorder %s35, 0
      %p165 = por %p163, %p164
      %p166 = scmp.ne.s32.totalorder %s158, %s160
      %p167 = scmp.eq.s32.totalorder %s40, 1
      %p168 = por %p166, %p167
      %p169 = scmp.ne.s32.totalorder %s160, %s161
      %p170 = scmp.eq.s32.totalorder %s40, 0
      %p171 = por %p169, %p170
      %p172 = scmp.ne.s32.totalorder %s160, %s161
      %p173 = scmp.eq.s32.totalorder %s41, 1
      %p174 = por %p172, %p173
      %p176 = scmp.ne.s32.totalorder %s161, %s175
      %p177 = scmp.eq.s32.totalorder %s41, 0
      %p178 = por %p176, %p177
      %s180 = sadd.s32 %s179, 1
      %p183 = scmp.eq.s32.totalorder %s35, 1
      %p184 = scmp.ne.s32.totalorder %s179, %s181
      %p185 = scmp.eq.s32.totalorder %s35, 0
      %p186 = por %p184, %p185
      %p187 = scmp.ne.s32.totalorder %s179, %s181
      %p188 = scmp.eq.s32.totalorder %s40, 1
      %p189 = por %p187, %p188
      %p190 = scmp.ne.s32.totalorder %s181, %s182
      %p191 = scmp.eq.s32.totalorder %s40, 0
      %p192 = por %p190, %p191
      %p193 = scmp.ne.s32.totalorder %s181, %s182
      %p194 = scmp.eq.s32.totalorder %s41, 1
      %p195 = por %p193, %p194
      %p197 = scmp.ne.s32.totalorder %s182, %s196
      %p198 = scmp.eq.s32.totalorder %s41, 0
      %p199 = por %p197, %p198
      %s201 = sadd.s32 %s200, 1
      %p204 = scmp.eq.s32.totalorder %s35, 1
      %p205 = scmp.ne.s32.totalorder %s200, %s202
      %p206 = scmp.eq.s32.totalorder %s35, 0
      %p207 = por %p205, %p206
      %p208 = scmp.ne.s32.totalorder %s200, %s202
      %p209 = scmp.eq.s32.totalorder %s40, 1
      %p210 = por %p208, %p209
      %p211 = scmp.ne.s32.totalorder %s202, %s203
      %p212 = scmp.eq.s32.totalorder %s40, 0
      %p213 = por %p211, %p212
      %p214 = scmp.ne.s32.totalorder %s202, %s203
      %p215 = scmp.eq.s32.totalorder %s41, 1
      %p216 = por %p214, %p215
      %p218 = scmp.ne.s32.totalorder %s203, %s217
      %p219 = scmp.eq.s32.totalorder %s41, 0
      %p220 = por %p218, %p219
      %s222 = sadd.s32 %s221, 1
      %p225 = scmp.eq.s32.totalorder %s35, 1
      %p226 = scmp.ne.s32.totalorder %s221, %s223
      %p227 = scmp.eq.s32.totalorder %s35, 0
      %p228 = por %p226, %p227
      %p229 = scmp.ne.s32.totalorder %s221, %s223
      %p230 = scmp.eq.s32.totalorder %s40, 1
      %p231 = por %p229, %p230
      %p232 = scmp.ne.s32.totalorder %s223, %s224
      %p233 = scmp.eq.s32.totalorder %s40, 0
      %p234 = por %p232, %p233
      %p235 = scmp.ne.s32.totalorder %s223, %s224
      %p236 = scmp.eq.s32.totalorder %s41, 1
      %p237 = por %p235, %p236
      %p239 = scmp.ne.s32.totalorder %s224, %s238
      %p240 = scmp.eq.s32.totalorder %s41, 0
      %p241 = por %p239, %p240
      %s243 = sadd.s32 %s242, 1
      %p246 = scmp.eq.s32.totalorder %s35, 1
      %p247 = scmp.ne.s32.totalorder %s242, %s244
      %p248 = scmp.eq.s32.totalorder %s35, 0
      %p249 = por %p247, %p248
      %p250 = scmp.ne.s32.totalorder %s242, %s244
      %p251 = scmp.eq.s32.totalorder %s40, 1
      %p252 = por %p250, %p251
      %p253 = scmp.ne.s32.totalorder %s244, %s245
      %p254 = scmp.eq.s32.totalorder %s40, 0
      %p255 = por %p253, %p254
      %p256 = scmp.ne.s32.totalorder %s244, %s245
      %p257 = scmp.eq.s32.totalorder %s41, 1
      %p258 = por %p256, %p257
      %p260 = scmp.ne.s32.totalorder %s245, %s259
      %p261 = scmp.eq.s32.totalorder %s41, 0
      %p262 = por %p260, %p261
      %s264 = sadd.s32 %s263, 1
      %p267 = scmp.eq.s32.totalorder %s35, 1
      %p268 = scmp.ne.s32.totalorder %s263, %s265
      %p269 = scmp.eq.s32.totalorder %s35, 0
      %p270 = por %p268, %p269
      %p271 = scmp.ne.s32.totalorder %s263, %s265
      %p272 = scmp.eq.s32.totalorder %s40, 1
      %p273 = por %p271, %p272
      %p274 = scmp.ne.s32.totalorder %s265, %s266
      %p275 = scmp.eq.s32.totalorder %s40, 0
      %p276 = por %p274, %p275
      %p277 = scmp.ne.s32.totalorder %s265, %s266
      %p278 = scmp.eq.s32.totalorder %s41, 1
      %p279 = por %p277, %p278
      %p281 = scmp.ne.s32.totalorder %s266, %s280
      %p282 = scmp.eq.s32.totalorder %s41, 0
      %p283 = por %p281, %p282
      %s285 = sadd.s32 %s284, 1
      %p288 = scmp.eq.s32.totalorder %s35, 1
      %p289 = scmp.ne.s32.totalorder %s284, %s286
      %p290 = scmp.eq.s32.totalorder %s35, 0
      %p291 = por %p289, %p290
      %p292 = scmp.ne.s32.totalorder %s284, %s286
      %p293 = scmp.eq.s32.totalorder %s40, 1
      %p294 = por %p292, %p293
      %p295 = scmp.ne.s32.totalorder %s286, %s287
      %p296 = scmp.eq.s32.totalorder %s40, 0
      %p297 = por %p295, %p296
      %p298 = scmp.ne.s32.totalorder %s286, %s287
      %p299 = scmp.eq.s32.totalorder %s41, 1
      %p300 = por %p298, %p299
      %p302 = scmp.ne.s32.totalorder %s287, %s301
      %p303 = scmp.eq.s32.totalorder %s41, 0
      %p304 = por %p302, %p303
      %s306 = sadd.s32 %s305, 1
      %p309 = scmp.eq.s32.totalorder %s35, 1
      %p310 = scmp.ne.s32.totalorder %s305, %s307
      %p311 = scmp.eq.s32.totalorder %s35, 0
      %p312 = por %p310, %p311
      %p313 = scmp.ne.s32.totalorder %s305, %s307
      %p314 = scmp.eq.s32.totalorder %s40, 1
      %p315 = por %p313, %p314
      %p316 = scmp.ne.s32.totalorder %s307, %s308
      %p317 = scmp.eq.s32.totalorder %s40, 0
      %p318 = por %p316, %p317
      %p319 = scmp.ne.s32.totalorder %s307, %s308
      %p320 = scmp.eq.s32.totalorder %s41, 1
      %p321 = por %p319, %p320
      %p323 = scmp.ne.s32.totalorder %s308, %s322
      %p324 = scmp.eq.s32.totalorder %s41, 0
      %p325 = por %p323, %p324
      %s327 = sadd.s32 %s326, 1
      %p330 = scmp.eq.s32.totalorder %s35, 1
      %p331 = scmp.ne.s32.totalorder %s326, %s328
      %p332 = scmp.eq.s32.totalorder %s35, 0
      %p333 = por %p331, %p332
      %p334 = scmp.ne.s32.totalorder %s326, %s328
      %p335 = scmp.eq.s32.totalorder %s40, 1
      %p336 = por %p334, %p335
      %p337 = scmp.ne.s32.totalorder %s328, %s329
      %p338 = scmp.eq.s32.totalorder %s40, 0
      %p339 = por %p337, %p338
      %p340 = scmp.ne.s32.totalorder %s328, %s329
      %p341 = scmp.eq.s32.totalorder %s41, 1
      %p342 = por %p340, %p341
      %p344 = scmp.ne.s32.totalorder %s329, %s343
      %p345 = scmp.eq.s32.totalorder %s41, 0
      %p346 = por %p344, %p345
      %s348 = sadd.s32 %s347, 1
      %p351 = scmp.eq.s32.totalorder %s35, 1
      %p352 = scmp.ne.s32.totalorder %s347, %s349
      %p353 = scmp.eq.s32.totalorder %s35, 0
      %p354 = por %p352, %p353
      %p355 = scmp.ne.s32.totalorder %s347, %s349
      %p356 = scmp.eq.s32.totalorder %s40, 1
      %p357 = por %p355, %p356
      %p358 = scmp.ne.s32.totalorder %s349, %s350
      %p359 = scmp.eq.s32.totalorder %s40, 0
      %p360 = por %p358, %p359
      %p361 = scmp.ne.s32.totalorder %s349, %s350
      %p362 = scmp.eq.s32.totalorder %s41, 1
      %p363 = por %p361, %p362
      %p365 = scmp.ne.s32.totalorder %s350, %s364
      %p366 = scmp.eq.s32.totalorder %s41, 0
      %p367 = por %p365, %p366
      %s369 = sadd.s32 %s368, 1
      %p372 = scmp.eq.s32.totalorder %s35, 1
      %p373 = scmp.ne.s32.totalorder %s368, %s370
      %p374 = scmp.eq.s32.totalorder %s35, 0
      %p375 = por %p373, %p374
      %p376 = scmp.ne.s32.totalorder %s368, %s370
      %p377 = scmp.eq.s32.totalorder %s40, 1
      %p378 = por %p376, %p377
      %p379 = scmp.ne.s32.totalorder %s370, %s371
      %p380 = scmp.eq.s32.totalorder %s40, 0
      %p381 = por %p379, %p380
      %p382 = scmp.ne.s32.totalorder %s370, %s371
      %p383 = scmp.eq.s32.totalorder %s41, 1
      %p384 = por %p382, %p383
      %p386 = scmp.ne.s32.totalorder %s371, %s385
      %p387 = scmp.eq.s32.totalorder %s41, 0
      %p388 = por %p386, %p387
      %s390 = sadd.s32 %s389, 1
      %p393 = scmp.eq.s32.totalorder %s35, 1
      %p394 = scmp.ne.s32.totalorder %s389, %s391
      %p395 = scmp.eq.s32.totalorder %s35, 0
      %p396 = por %p394, %p395
      %p397 = scmp.ne.s32.totalorder %s389, %s391
      %p398 = scmp.eq.s32.totalorder %s40, 1
      %p399 = por %p397, %p398
      %p400 = scmp.ne.s32.totalorder %s391, %s392
      %p401 = scmp.eq.s32.totalorder %s40, 0
      %p402 = por %p400, %p401
      %p403 = scmp.ne.s32.totalorder %s391, %s392
      %p404 = scmp.eq.s32.totalorder %s41, 1
      %p405 = por %p403, %p404
      %p407 = scmp.ne.s32.totalorder %s392, %s406
      %p408 = scmp.eq.s32.totalorder %s41, 0
      %p409 = por %p407, %p408
      %s410 = ssub.s32 %s35, %s42
      %p411 = scmp.eq.s32.totalorder %s410, 0
      %s413 = sadd.s32 %s412, 1
      %s414 = scalar_select %p411, %s412, %s413
      %p417 = pneg %p411
      %p418 = scmp.eq.s32.totalorder %s35, 1
      %p419 = por %p417, %p418
      %p420 = scmp.ne.s32.totalorder %s412, %s415
      %p421 = scmp.eq.s32.totalorder %s35, 0
      %p422 = por %p420, %p421
      %p423 = scmp.ne.s32.totalorder %s412, %s415
      %p424 = scmp.eq.s32.totalorder %s40, 1
      %p425 = por %p423, %p424
      %p426 = scmp.ne.s32.totalorder %s415, %s416
      %p427 = scmp.eq.s32.totalorder %s40, 0
      %p428 = por %p426, %p427
      %p429 = scmp.ne.s32.totalorder %s415, %s416
      %p430 = scmp.eq.s32.totalorder %s41, 1
      %p431 = por %p429, %p430
      %p433 = scmp.ne.s32.totalorder %s416, %s432
      %p434 = scmp.eq.s32.totalorder %s41, 0
      %p435 = por %p433, %p434
      %p436 = scmp.le.s32.totalorder 1, %s35
      %p437 = scmp.lt.s32.totalorder %s35, 3
      %p438 = pnand %p436, %p437
      %p439 = pneg %p438
      // Predicated region
      $region9: #{tpu_custom_call.1} parent=5 // pred_check
        _
      $region10: #{tpu_custom_call.1} parent=5 // pred_check_branch
        %441 = sbr.rel (%p438) target = $region12
      $region11: #{tpu_custom_call.1} parent=5 // pred_region
        %s442 = ssub.s32 %s35, 1
        // Predicated region
        $region13: #{tpu_custom_call.1} parent=11 // pred_check
          %p443 = pneg %p108
        $region14: #{tpu_custom_call.1} parent=11 // pred_check_branch
          %445 = sbr.rel (%p443) target = $region16
        $region15: #{tpu_custom_call.1} parent=11 // pred_region
          _
        $region16: #{tpu_custom_call.1} parent=11 // pred_fallthru
          _
        // Predicated region
        $region17: #{tpu_custom_call.1} parent=11 // pred_check
          %p446 = pneg %p129
        $region18: #{tpu_custom_call.1} parent=11 // pred_check_branch
          %448 = sbr.rel (%p446) target = $region20
        $region19: #{tpu_custom_call.1} parent=11 // pred_region
          %s450 = ssub.s32 32, 32
          %451 = vsyncadd [#allocation6], %s450
          %s453 = sshll.u32 [#allocation7], 4
          %s454 = int_to_ptr.vmem [resolvable:$true] %s453
          %456 = dma.hbm_to_vmem [thread:$0]  %s3, 32, %s454, [#allocation6]
        $region20: #{tpu_custom_call.1} parent=11 // pred_fallthru
          _
        // Predicated region
        $region21: #{tpu_custom_call.1} parent=11 // pred_check
          %p457 = pneg %p150
        $region22: #{tpu_custom_call.1} parent=11 // pred_check_branch
          %459 = sbr.rel (%p457) target = $region24
        $region23: #{tpu_custom_call.1} parent=11 // pred_region
          %s461 = ssub.s32 256, 256
          %462 = vsyncadd [#allocation9], %s461
          %s463 = sshll.u32 [#allocation8], 4
          %s464 = int_to_ptr.vmem [resolvable:$true] %s463
          %469 = dma.hbm_to_vmem [thread:$0]  %s4, 256, %s464, [#allocation9], 128, 128, 8
        $region24: #{tpu_custom_call.1} parent=11 // pred_fallthru
          _
        // Predicated region
        $region25: #{tpu_custom_call.1} parent=11 // pred_check
          %p470 = pneg %p171
        $region26: #{tpu_custom_call.1} parent=11 // pred_check_branch
          %472 = sbr.rel (%p470) target = $region28
        $region27: #{tpu_custom_call.1} parent=11 // pred_region
          _
        $region28: #{tpu_custom_call.1} parent=11 // pred_fallthru
          _
        // Predicated region
        $region29: #{tpu_custom_call.1} parent=11 // pred_check
          %p473 = pneg %p192
        $region30: #{tpu_custom_call.1} parent=11 // pred_check_branch
          %475 = sbr.rel (%p473) target = $region32
        $region31: #{tpu_custom_call.1} parent=11 // pred_region
          _
        $region32: #{tpu_custom_call.1} parent=11 // pred_fallthru
          _
        // Predicated region
        $region33: #{tpu_custom_call.1} parent=11 // pred_check
          %p476 = pneg %p213
        $region34: #{tpu_custom_call.1} parent=11 // pred_check_branch
          %478 = sbr.rel (%p476) target = $region36
        $region35: #{tpu_custom_call.1} parent=11 // pred_region
          _
        $region36: #{tpu_custom_call.1} parent=11 // pred_fallthru
          _
        // Predicated region
        $region37: #{tpu_custom_call.1} parent=11 // pred_check
          %p479 = pneg %p234
        $region38: #{tpu_custom_call.1} parent=11 // pred_check_branch
          %481 = sbr.rel (%p479) target = $region40
        $region39: #{tpu_custom_call.1} parent=11 // pred_region
          %s483 = ssub.s32 2048, 2048
          %484 = vsyncadd [#allocation9], %s483
          %s485 = sshll.u32 [#allocation10], 4
          %s486 = int_to_ptr.vmem [resolvable:$true] %s485
          %491 = dma.hbm_to_vmem [thread:$0]  %s8, 2048, %s486, [#allocation9], 128, 128, 8
        $region40: #{tpu_custom_call.1} parent=11 // pred_fallthru
          _
        // Predicated region
        $region41: #{tpu_custom_call.1} parent=11 // pred_check
          %p492 = pneg %p255
        $region42: #{tpu_custom_call.1} parent=11 // pred_check_branch
          %494 = sbr.rel (%p492) target = $region44
        $region43: #{tpu_custom_call.1} parent=11 // pred_region
          _
        $region44: #{tpu_custom_call.1} parent=11 // pred_fallthru
          _
        // Predicated region
        $region45: #{tpu_custom_call.1} parent=11 // pred_check
          %p495 = pneg %p276
        $region46: #{tpu_custom_call.1} parent=11 // pred_check_branch
          %497 = sbr.rel (%p495) target = $region48
        $region47: #{tpu_custom_call.1} parent=11 // pred_region
          %s499 = ssub.s32 4096, 4096
          %500 = vsyncadd [#allocation12], %s499
          %s501 = sshll.u32 [#allocation11], 4
          %s502 = int_to_ptr.vmem [resolvable:$true] %s501
          %507 = dma.hbm_to_vmem [thread:$0]  %s10, 4096, %s502, [#allocation12], 256, 256, 16
        $region48: #{tpu_custom_call.1} parent=11 // pred_fallthru
          _
        // Predicated region
        $region49: #{tpu_custom_call.1} parent=11 // pred_check
          %p508 = pneg %p297
        $region50: #{tpu_custom_call.1} parent=11 // pred_check_branch
          %510 = sbr.rel (%p508) target = $region52
        $region51: #{tpu_custom_call.1} parent=11 // pred_region
          _
        $region52: #{tpu_custom_call.1} parent=11 // pred_fallthru
          _
        // Predicated region
        $region53: #{tpu_custom_call.1} parent=11 // pred_check
          %p511 = pneg %p318
        $region54: #{tpu_custom_call.1} parent=11 // pred_check_branch
          %513 = sbr.rel (%p511) target = $region56
        $region55: #{tpu_custom_call.1} parent=11 // pred_region
          %s515 = ssub.s32 2048, 2048
          %516 = vsyncadd [#allocation12], %s515
          %s517 = sshll.u32 [#allocation13], 4
          %s518 = int_to_ptr.vmem [resolvable:$true] %s517
          %523 = dma.hbm_to_vmem [thread:$0]  %s12, 2048, %s518, [#allocation12], 128, 128, 8
        $region56: #{tpu_custom_call.1} parent=11 // pred_fallthru
          _
        // Predicated region
        $region57: #{tpu_custom_call.1} parent=11 // pred_check
          %p524 = pneg %p339
        $region58: #{tpu_custom_call.1} parent=11 // pred_check_branch
          %526 = sbr.rel (%p524) target = $region60
        $region59: #{tpu_custom_call.1} parent=11 // pred_region
          %s528 = ssub.s32 4096, 4096
          %529 = vsyncadd [#allocation15], %s528
          %s530 = sshll.u32 [#allocation14], 4
          %s531 = int_to_ptr.vmem [resolvable:$true] %s530
          %536 = dma.hbm_to_vmem [thread:$0]  %s13, 4096, %s531, [#allocation15], 256, 256, 16
        $region60: #{tpu_custom_call.1} parent=11 // pred_fallthru
          _
        // Predicated region
        $region61: #{tpu_custom_call.1} parent=11 // pred_check
          %p537 = pneg %p360
        $region62: #{tpu_custom_call.1} parent=11 // pred_check_branch
          %539 = sbr.rel (%p537) target = $region64
        $region63: #{tpu_custom_call.1} parent=11 // pred_region
          _
        $region64: #{tpu_custom_call.1} parent=11 // pred_fallthru
          _
        // Predicated region
        $region65: #{tpu_custom_call.1} parent=11 // pred_check
          %p540 = pneg %p381
        $region66: #{tpu_custom_call.1} parent=11 // pred_check_branch
          %542 = sbr.rel (%p540) target = $region68
        $region67: #{tpu_custom_call.1} parent=11 // pred_region
          %s544 = ssub.s32 4096, 4096
          %545 = vsyncadd [#allocation15], %s544
          %s546 = sshll.u32 [#allocation16], 4
          %s547 = int_to_ptr.vmem [resolvable:$true] %s546
          %552 = dma.hbm_to_vmem [thread:$0]  %s15, 4096, %s547, [#allocation15], 128, 128, 8
        $region68: #{tpu_custom_call.1} parent=11 // pred_fallthru
          _
        // Predicated region
        $region69: #{tpu_custom_call.1} parent=11 // pred_check
          %p553 = pneg %p402
        $region70: #{tpu_custom_call.1} parent=11 // pred_check_branch
          %555 = sbr.rel (%p553) target = $region72
        $region71: #{tpu_custom_call.1} parent=11 // pred_region
          _
        $region72: #{tpu_custom_call.1} parent=11 // pred_fallthru
          _
      $region12: #{tpu_custom_call.1} parent=5 // pred_fallthru
        _
      %p556 = scmp.lt.s32.totalorder %s35, 2
      // Predicated region
      $region73: #{tpu_custom_call.1} parent=5 // pred_check
        %p557 = pneg %p556
      $region74: #{tpu_custom_call.1} parent=5 // pred_check_branch
        %559 = sbr.rel (%p557) target = $region76
      $region75: #{tpu_custom_call.1} parent=5 // pred_region
        // Predicated region
        $region77: #{tpu_custom_call.1} parent=75 // pred_check
          %p560 = pneg %p55
        $region78: #{tpu_custom_call.1} parent=75 // pred_check_branch
          %562 = sbr.rel (%p560) target = $region80
        $region79: #{tpu_custom_call.1} parent=75 // pred_region
          %s563 = sand.u32 %s45, 1
          %s564 = scalar_lea.sflag [#allocation3], %s563
          %s565 = sand.u32 %s45, 1
          %s566 = smul.addr %s565, 8
          %s567 = scalar_lea.vmem [#allocation2], %s566
          %s568 = smul.u32 4, %s35
          %s570 = ssub.s32 128, 128
          %571 = vsyncadd %s564, %s570
          %s572 = smul.addr %s568, 32
          %s573 = scalar_lea.hbm %s0, %s572
          %s574 = sshll.u32 %s567, 4
          %s575 = int_to_ptr.vmem [resolvable:$true] %s574
          %580 = dma.hbm_to_vmem [thread:$0]  %s573, 128, %s575, %s564, 32, 32, 2
        $region80: #{tpu_custom_call.1} parent=75 // pred_fallthru
          _
        // Predicated region
        $region81: #{tpu_custom_call.1} parent=75 // pred_check
          %p581 = pneg %p81
        $region82: #{tpu_custom_call.1} parent=75 // pred_check_branch
          %583 = sbr.rel (%p581) target = $region84
        $region83: #{tpu_custom_call.1} parent=75 // pred_region
          %s584 = sand.u32 %s35, 1
          %s585 = scalar_lea.sflag [#allocation6], %s584
          %s586 = sand.u32 %s71, 1
          %s587 = smul.addr %s586, 64
          %s588 = scalar_lea.vmem [#allocation5], %s587
          %s589 = smul.u32 4, %s35
          %s591 = ssub.s32 1024, 1024
          %592 = vsyncadd %s585, %s591
          %s593 = smul.addr %s589, 2
          %s594 = smul.addr %s593, 128
          %s595 = scalar_lea.hbm %s1, %s594
          %s596 = sshll.u32 %s588, 4
          %s597 = int_to_ptr.vmem [resolvable:$true] %s596
          %602 = dma.hbm_to_vmem [thread:$0]  %s595, 1024, %s597, %s585, 128, 128, 8
        $region84: #{tpu_custom_call.1} parent=75 // pred_fallthru
          _
      $region76: #{tpu_custom_call.1} parent=5 // pred_fallthru
        _
      %p603 = scmp.le.s32.totalorder 1, %s35
      %p604 = scmp.lt.s32.totalorder %s35, 3
      %p605 = pnand %p603, %p604
      %p606 = pneg %p605
      // Predicated region
      $region85: #{tpu_custom_call.1} parent=5 // pred_check
        _
      $region86: #{tpu_custom_call.1} parent=5 // pred_check_branch
        %608 = sbr.rel (%p605) target = $region88
      $region87: #{tpu_custom_call.1} parent=5 // pred_region
        %s609 = ssub.s32 %s35, 1
        %s610 = sand.u32 %s48, 1
        %s611 = scalar_lea.sflag [#allocation3], %s610
        %s612 = sand.u32 %s48, 1
        %s613 = smul.addr %s612, 8
        %s614 = scalar_lea.vmem [#allocation2], %s613
        // Predicated region
        $region89: #{tpu_custom_call.1} parent=87 // pred_check
          %p615 = pneg %p61
        $region90: #{tpu_custom_call.1} parent=87 // pred_check_branch
          %617 = sbr.rel (%p615) target = $region92
        $region91: #{tpu_custom_call.1} parent=87 // pred_region
          %618 = dma.done %s611, 128
        $region92: #{tpu_custom_call.1} parent=87 // pred_fallthru
          _
        %s619 = sand.u32 %s40, 1
        %s620 = scalar_lea.sflag [#allocation6], %s619
        %s621 = sand.u32 %s74, 1
        %s622 = smul.addr %s621, 64
        %s623 = scalar_lea.vmem [#allocation5], %s622
        // Predicated region
        $region93: #{tpu_custom_call.1} parent=87 // pred_check
          %p624 = pneg %p87
        $region94: #{tpu_custom_call.1} parent=87 // pred_check_branch
          %626 = sbr.rel (%p624) target = $region96
        $region95: #{tpu_custom_call.1} parent=87 // pred_region
          %627 = dma.done %s620, 1024
        $region96: #{tpu_custom_call.1} parent=87 // pred_fallthru
          _
        // Predicated region
        $region97: #{tpu_custom_call.1} parent=87 // pred_check
          %p628 = pneg %p129
        $region98: #{tpu_custom_call.1} parent=87 // pred_check_branch
          %630 = sbr.rel (%p628) target = $region100
        $region99: #{tpu_custom_call.1} parent=87 // pred_region
          %631 = dma.done [#allocation6], 32
        $region100: #{tpu_custom_call.1} parent=87 // pred_fallthru
          _
        // Predicated region
        $region101: #{tpu_custom_call.1} parent=87 // pred_check
          %p632 = pneg %p150
        $region102: #{tpu_custom_call.1} parent=87 // pred_check_branch
          %634 = sbr.rel (%p632) target = $region104
        $region103: #{tpu_custom_call.1} parent=87 // pred_region
          %635 = dma.done [#allocation9], 256
        $region104: #{tpu_custom_call.1} parent=87 // pred_fallthru
          _
        // Predicated region
        $region105: #{tpu_custom_call.1} parent=87 // pred_check
          %p636 = pneg %p234
        $region106: #{tpu_custom_call.1} parent=87 // pred_check_branch
          %638 = sbr.rel (%p636) target = $region108
        $region107: #{tpu_custom_call.1} parent=87 // pred_region
          %639 = dma.done [#allocation9], 2048
        $region108: #{tpu_custom_call.1} parent=87 // pred_fallthru
          _
        // Predicated region
        $region109: #{tpu_custom_call.1} parent=87 // pred_check
          %p640 = pneg %p276
        $region110: #{tpu_custom_call.1} parent=87 // pred_check_branch
          %642 = sbr.rel (%p640) target = $region112
        $region111: #{tpu_custom_call.1} parent=87 // pred_region
          %643 = dma.done [#allocation12], 4096
        $region112: #{tpu_custom_call.1} parent=87 // pred_fallthru
          _
        // Predicated region
        $region113: #{tpu_custom_call.1} parent=87 // pred_check
          %p644 = pneg %p318
        $region114: #{tpu_custom_call.1} parent=87 // pred_check_branch
          %646 = sbr.rel (%p644) target = $region116
        $region115: #{tpu_custom_call.1} parent=87 // pred_region
          %647 = dma.done [#allocation12], 2048
        $region116: #{tpu_custom_call.1} parent=87 // pred_fallthru
          _
        // Predicated region
        $region117: #{tpu_custom_call.1} parent=87 // pred_check
          %p648 = pneg %p339
        $region118: #{tpu_custom_call.1} parent=87 // pred_check_branch
          %650 = sbr.rel (%p648) target = $region120
        $region119: #{tpu_custom_call.1} parent=87 // pred_region
          %651 = dma.done [#allocation15], 4096
        $region120: #{tpu_custom_call.1} parent=87 // pred_fallthru
          _
        // Predicated region
        $region121: #{tpu_custom_call.1} parent=87 // pred_check
          %p652 = pneg %p381
        $region122: #{tpu_custom_call.1} parent=87 // pred_check_branch
          %654 = sbr.rel (%p652) target = $region124
        $region123: #{tpu_custom_call.1} parent=87 // pred_region
          %655 = dma.done [#allocation15], 4096
        $region124: #{tpu_custom_call.1} parent=87 // pred_fallthru
          _
        %s656 = sand.u32 %s48, 1
        %s657 = scalar_lea.sflag [#allocation3], %s656
        %s658 = sand.u32 %s48, 1
        %s659 = smul.addr %s658, 8
        %s660 = scalar_lea.vmem [#allocation2], %s659
        %p661 = pneg %p61
        %p662 = pneg %p58
        %s663 = sand.u32 %s40, 1
        %s664 = scalar_lea.sflag [#allocation6], %s663
        %s665 = sand.u32 %s74, 1
        %s666 = smul.addr %s665, 64
        %s667 = scalar_lea.vmem [#allocation5], %s666
        %p668 = pneg %p87
        %p669 = pneg %p84
        %p670 = pneg %p108
        %p671 = pneg %p105
        %p672 = pneg %p129
        %p673 = pneg %p126
        %p674 = pneg %p150
        %p675 = pneg %p147
        %p676 = pneg %p171
        %p677 = pneg %p168
        %p678 = pneg %p192
        %p679 = pneg %p189
        %p680 = pneg %p213
        %p681 = pneg %p210
        %p682 = pneg %p234
        %p683 = pneg %p231
        %p684 = pneg %p255
        %p685 = pneg %p252
        %p686 = pneg %p276
        %p687 = pneg %p273
        %p688 = pneg %p297
        %p689 = pneg %p294
        %p690 = pneg %p318
        %p691 = pneg %p315
        %p692 = pneg %p339
        %p693 = pneg %p336
        %p694 = pneg %p360
        %p695 = pneg %p357
        %p696 = pneg %p381
        %p697 = pneg %p378
        %p698 = pneg %p402
        %p699 = pneg %p399
        %p700 = pneg %p428
        %p701 = pneg %p425
        %s702 = sand.u32 %s415, 1
        %s703 = scalar_lea.sflag [#allocation4], %s702
        %s704 = sand.u32 %s415, 1
        %s705 = smul.addr %s704, 8
        %s706 = scalar_lea.vmem [#allocation17], %s705
        %s707 = smul.u32 4, %s40
        %s708 = smul.u32 4, %s40
        %s709 = smul.u32 4, %s40
        %v710 = vld [vmem:[%s614] sm:$0x3]
        %v711 = vld [vmem:[%s614 + $0x2] sm:$0x3]
        %v712 = vld [vmem:[%s614 + $0x4] sm:$0x3]
        %v713 = vld [vmem:[%s614 + $0x6] sm:$0x3]
        %v714 = vld [vmem:[%s623] sm:$0xff]
        %v715 = vld [vmem:[%s623 + $0x8] sm:$0xff]
        %v716 = vld [vmem:[%s623 + $0x10] sm:$0xff]
        %v717 = vld [vmem:[%s623 + $0x18] sm:$0xff]
        %v718 = vld [vmem:[%s623 + $0x20] sm:$0xff]
        %v719 = vld [vmem:[%s623 + $0x28] sm:$0xff]
        %v720 = vld [vmem:[%s623 + $0x30] sm:$0xff]
        %v721 = vld [vmem:[%s623 + $0x38] sm:$0xff]
        %vm722 = vcmask 1041408
        %v723 = vsel %vm722, %v710, 0.0
        %724 = vadd.xlane.f32.xlu0 %v723
        %v725 = vpop.xlane.xlu0 %724
        %v726 = vsel %vm722, %v711, 0.0
        %727 = vadd.xlane.f32.xlu0 %v726
        %v728 = vpop.xlane.xlu0 %727
        %v729 = vsel %vm722, %v712, 0.0
        %730 = vadd.xlane.f32.xlu0 %v729
        %v731 = vpop.xlane.xlu0 %730
        %v732 = vsel %vm722, %v713, 0.0
        %733 = vadd.xlane.f32.xlu0 %v732
        %v734 = vpop.xlane.xlu0 %733
        %v735 = vrcp.pop 128.0
        %v736 = vmul.f32 %v725, %v735
        %v737 = vmul.f32 %v728, %v735
        %v738 = vmul.f32 %v731, %v735
        %v739 = vmul.f32 %v734, %v735
        %v740 = vsel %vm722, %v736, 0.0
        %v741 = vrot.slane %v740, 4
        %v742 = vadd.f32 %v740, %v741
        %v743 = vrot.slane %v742, 2
        %v744 = vadd.f32 %v742, %v743
        %v745 = vrot.slane %v744, 1
        %v746 = vadd.f32 %v744, %v745
        %v747 = vsel %vm722, %v737, 0.0
        %v748 = vrot.slane %v747, 4
        %v749 = vadd.f32 %v747, %v748
        %v750 = vrot.slane %v749, 2
        %v751 = vadd.f32 %v749, %v750
        %v752 = vrot.slane %v751, 1
        %v753 = vadd.f32 %v751, %v752
        %v754 = vsel %vm722, %v738, 0.0
        %v755 = vrot.slane %v754, 4
        %v756 = vadd.f32 %v754, %v755
        %v757 = vrot.slane %v756, 2
        %v758 = vadd.f32 %v756, %v757
        %v759 = vrot.slane %v758, 1
        %v760 = vadd.f32 %v758, %v759
        %v761 = vsel %vm722, %v739, 0.0
        %v762 = vrot.slane %v761, 4
        %v763 = vadd.f32 %v761, %v762
        %v764 = vrot.slane %v763, 2
        %v765 = vadd.f32 %v763, %v764
        %v766 = vrot.slane %v765, 1
        %v767 = vadd.f32 %v765, %v766
        %v768 = vrcp.pop 2.0
        %v769 = vmul.f32 %v746, %v768
        %v770 = vmul.f32 %v753, %v768
        %v771 = vmul.f32 %v760, %v768
        %v772 = vmul.f32 %v767, %v768
        %v773 = vsub.f32 %v710, %v769
        %v774 = vsub.f32 %v711, %v770
        %v775 = vsub.f32 %v712, %v771
        %v776 = vsub.f32 %v713, %v772
        %v777 = vmul.f32 %v773, %v773
        %v778 = vmul.f32 %v774, %v774
        %v779 = vmul.f32 %v775, %v775
        %v780 = vmul.f32 %v776, %v776
        %v781 = vsel %vm722, %v777, 0.0
        %782 = vadd.xlane.f32.xlu0 %v781
        %v783 = vpop.xlane.xlu0 %782
        %v784 = vsel %vm722, %v778, 0.0
        %785 = vadd.xlane.f32.xlu0 %v784
        %v786 = vpop.xlane.xlu0 %785
        %v787 = vsel %vm722, %v779, 0.0
        %788 = vadd.xlane.f32.xlu0 %v787
        %v789 = vpop.xlane.xlu0 %788
        %v790 = vsel %vm722, %v780, 0.0
        %791 = vadd.xlane.f32.xlu0 %v790
        %v792 = vpop.xlane.xlu0 %791
        %v793 = vmul.f32 %v783, %v735
        %v794 = vmul.f32 %v786, %v735
        %v795 = vmul.f32 %v789, %v735
        %v796 = vmul.f32 %v792, %v735
        %v797 = vsel %vm722, %v793, 0.0
        %v798 = vrot.slane %v797, 4
        %v799 = vadd.f32 %v797, %v798
        %v800 = vrot.slane %v799, 2
        %v801 = vadd.f32 %v799, %v800
        %v802 = vrot.slane %v801, 1
        %v803 = vadd.f32 %v801, %v802
        %v804 = vsel %vm722, %v794, 0.0
        %v805 = vrot.slane %v804, 4
        %v806 = vadd.f32 %v804, %v805
        %v807 = vrot.slane %v806, 2
        %v808 = vadd.f32 %v806, %v807
        %v809 = vrot.slane %v808, 1
        %v810 = vadd.f32 %v808, %v809
        %v811 = vsel %vm722, %v795, 0.0
        %v812 = vrot.slane %v811, 4
        %v813 = vadd.f32 %v811, %v812
        %v814 = vrot.slane %v813, 2
        %v815 = vadd.f32 %v813, %v814
        %v816 = vrot.slane %v815, 1
        %v817 = vadd.f32 %v815, %v816
        %v818 = vsel %vm722, %v796, 0.0
        %v819 = vrot.slane %v818, 4
        %v820 = vadd.f32 %v818, %v819
        %v821 = vrot.slane %v820, 2
        %v822 = vadd.f32 %v820, %v821
        %v823 = vrot.slane %v822, 1
        %v824 = vadd.f32 %v822, %v823
        %v825 = vmul.f32 %v803, %v768
        %v826 = vmul.f32 %v810, %v768
        %v827 = vmul.f32 %v817, %v768
        %v828 = vmul.f32 %v824, %v768
        %v829 = vadd.f32 %v825, 1e-05
        %v830 = vadd.f32 %v826, 1e-05
        %v831 = vadd.f32 %v827, 1e-05
        %v832 = vadd.f32 %v828, 1e-05
        %v833 = vrsqrt.pop %v829
        %v834 = vrsqrt.pop %v830
        %v835 = vrsqrt.pop %v831
        %v836 = vrsqrt.pop %v832
        %v837 = vmul.f32 %v773, %v833
        %v838 = vmul.f32 %v774, %v834
        %v839 = vmul.f32 %v775, %v835
        %v840 = vmul.f32 %v776, %v836
        %841 = vadd.xlane.f32.xlu0 %v714
        %v842 = vpop.xlane.xlu0 %841
        %843 = vadd.xlane.f32.xlu0 %v715
        %v844 = vpop.xlane.xlu0 %843
        %845 = vadd.xlane.f32.xlu0 %v716
        %v846 = vpop.xlane.xlu0 %845
        %847 = vadd.xlane.f32.xlu0 %v717
        %v848 = vpop.xlane.xlu0 %847
        %849 = vadd.xlane.f32.xlu0 %v718
        %v850 = vpop.xlane.xlu0 %849
        %851 = vadd.xlane.f32.xlu0 %v719
        %v852 = vpop.xlane.xlu0 %851
        %853 = vadd.xlane.f32.xlu0 %v720
        %v854 = vpop.xlane.xlu0 %853
        %855 = vadd.xlane.f32.xlu0 %v721
        %v856 = vpop.xlane.xlu0 %855
        %v857 = vmul.f32 %v842, %v735
        %v858 = vmul.f32 %v844, %v735
        %v859 = vmul.f32 %v846, %v735
        %v860 = vmul.f32 %v848, %v735
        %v861 = vmul.f32 %v850, %v735
        %v862 = vmul.f32 %v852, %v735
        %v863 = vmul.f32 %v854, %v735
        %v864 = vmul.f32 %v856, %v735
        %v865 = vadd.f32 %v857, %v858
        %v866 = vrot.slane %v865, 4
        %v867 = vadd.f32 %v865, %v866
        %v868 = vrot.slane %v867, 2
        %v869 = vadd.f32 %v867, %v868
        %v870 = vrot.slane %v869, 1
        %v871 = vadd.f32 %v869, %v870
        %v872 = vadd.f32 %v859, %v860
        %v873 = vrot.slane %v872, 4
        %v874 = vadd.f32 %v872, %v873
        %v875 = vrot.slane %v874, 2
        %v876 = vadd.f32 %v874, %v875
        %v877 = vrot.slane %v876, 1
        %v878 = vadd.f32 %v876, %v877
        %v879 = vadd.f32 %v861, %v862
        %v880 = vrot.slane %v879, 4
        %v881 = vadd.f32 %v879, %v880
        %v882 = vrot.slane %v881, 2
        %v883 = vadd.f32 %v881, %v882
        %v884 = vrot.slane %v883, 1
        %v885 = vadd.f32 %v883, %v884
        %v886 = vadd.f32 %v863, %v864
        %v887 = vrot.slane %v886, 4
        %v888 = vadd.f32 %v886, %v887
        %v889 = vrot.slane %v888, 2
        %v890 = vadd.f32 %v888, %v889
        %v891 = vrot.slane %v890, 1
        %v892 = vadd.f32 %v890, %v891
        %v893 = vrcp.pop 16.0
        %v894 = vmul.f32 %v871, %v893
        %v895 = vmul.f32 %v878, %v893
        %v896 = vmul.f32 %v885, %v893
        %v897 = vmul.f32 %v892, %v893
        %v898 = vsub.f32 %v714, %v894
        %v899 = vsub.f32 %v715, %v894
        %v900 = vsub.f32 %v716, %v895
        %v901 = vsub.f32 %v717, %v895
        %v902 = vsub.f32 %v718, %v896
        %v903 = vsub.f32 %v719, %v896
        %v904 = vsub.f32 %v720, %v897
        %v905 = vsub.f32 %v721, %v897
        %v906 = vmul.f32 %v898, %v898
        %v907 = vmul.f32 %v899, %v899
        %v908 = vmul.f32 %v900, %v900
        %v909 = vmul.f32 %v901, %v901
        %v910 = vmul.f32 %v902, %v902
        %v911 = vmul.f32 %v903, %v903
        %v912 = vmul.f32 %v904, %v904
        %v913 = vmul.f32 %v905, %v905
        %914 = vadd.xlane.f32.xlu0 %v906
        %v915 = vpop.xlane.xlu0 %914
        %916 = vadd.xlane.f32.xlu0 %v907
        %v917 = vpop.xlane.xlu0 %916
        %918 = vadd.xlane.f32.xlu0 %v908
        %v919 = vpop.xlane.xlu0 %918
        %920 = vadd.xlane.f32.xlu0 %v909
        %v921 = vpop.xlane.xlu0 %920
        %922 = vadd.xlane.f32.xlu0 %v910
        %v923 = vpop.xlane.xlu0 %922
        %924 = vadd.xlane.f32.xlu0 %v911
        %v925 = vpop.xlane.xlu0 %924
        %926 = vadd.xlane.f32.xlu0 %v912
        %v927 = vpop.xlane.xlu0 %926
        %928 = vadd.xlane.f32.xlu0 %v913
        %v929 = vpop.xlane.xlu0 %928
        %v930 = vmul.f32 %v915, %v735
        %v931 = vmul.f32 %v917, %v735
        %v932 = vmul.f32 %v919, %v735
        %v933 = vmul.f32 %v921, %v735
        %v934 = vmul.f32 %v923, %v735
        %v935 = vmul.f32 %v925, %v735
        %v936 = vmul.f32 %v927, %v735
        %v937 = vmul.f32 %v929, %v735
        %v938 = vadd.f32 %v930, %v931
        %v939 = vrot.slane %v938, 4
        %v940 = vadd.f32 %v938, %v939
        %v941 = vrot.slane %v940, 2
        %v942 = vadd.f32 %v940, %v941
        %v943 = vrot.slane %v942, 1
        %v944 = vadd.f32 %v942, %v943
        %v945 = vadd.f32 %v932, %v933
        %v946 = vrot.slane %v945, 4
        %v947 = vadd.f32 %v945, %v946
        %v948 = vrot.slane %v947, 2
        %v949 = vadd.f32 %v947, %v948
        %v950 = vrot.slane %v949, 1
        %v951 = vadd.f32 %v949, %v950
        %v952 = vadd.f32 %v934, %v935
        %v953 = vrot.slane %v952, 4
        %v954 = vadd.f32 %v952, %v953
        %v955 = vrot.slane %v954, 2
        %v956 = vadd.f32 %v954, %v955
        %v957 = vrot.slane %v956, 1
        %v958 = vadd.f32 %v956, %v957
        %v959 = vadd.f32 %v936, %v937
        %v960 = vrot.slane %v959, 4
        %v961 = vadd.f32 %v959, %v960
        %v962 = vrot.slane %v961, 2
        %v963 = vadd.f32 %v961, %v962
        %v964 = vrot.slane %v963, 1
        %v965 = vadd.f32 %v963, %v964
        %v966 = vmul.f32 %v944, %v893
        %v967 = vmul.f32 %v951, %v893
        %v968 = vmul.f32 %v958, %v893
        %v969 = vmul.f32 %v965, %v893
        %v970 = vadd.f32 %v966, 1e-05
        %v971 = vadd.f32 %v967, 1e-05
        %v972 = vadd.f32 %v968, 1e-05
        %v973 = vadd.f32 %v969, 1e-05
        %v974 = vrsqrt.pop %v970
        %v975 = vrsqrt.pop %v971
        %v976 = vrsqrt.pop %v972
        %v977 = vrsqrt.pop %v973
        %v978 = vmul.f32 %v898, %v974
        %v979 = vmul.f32 %v899, %v974
        %v980 = vmul.f32 %v900, %v975
        %v981 = vmul.f32 %v901, %v975
        %v982 = vmul.f32 %v902, %v976
        %v983 = vmul.f32 %v903, %v976
        %v984 = vmul.f32 %v904, %v977
        %v985 = vmul.f32 %v905, %v977
        %v986 = vld [vmem:[%s2] sm:$0x3]
        %v987 = vmul.f32 %v837, %v986
        %v988 = vmul.f32 %v838, %v986
        %v989 = vmul.f32 %v839, %v986
        %v990 = vmul.f32 %v840, %v986
        %v991 = vld [vmem:[#allocation7] sm:$0x3]
        %v992 = vadd.f32 %v987, %v991
        %v993 = vadd.f32 %v988, %v991
        %v994 = vadd.f32 %v989, %v991
        %v995 = vadd.f32 %v990, %v991
        %v996 = vld [vmem:[%s6] sm:$0x3]
        %v997 = vmul.f32 %v837, %v996
        %v998 = vmul.f32 %v838, %v996
        %v999 = vmul.f32 %v839, %v996
        %v1000 = vmul.f32 %v840, %v996
        %v1001 = vld [vmem:[%s7] sm:$0x3]
        %v1002 = vadd.f32 %v997, %v1001
        %v1003 = vadd.f32 %v998, %v1001
        %v1004 = vadd.f32 %v999, %v1001
        %v1005 = vadd.f32 %v1000, %v1001
        %v1006 = vld [vmem:[#allocation8] sm:$0xff]
        %v1007 = vld [vmem:[#allocation8 + $0x8] sm:$0xff]
        %v1008 = vmul.f32 %v978, %v1006
        %v1009 = vmul.f32 %v979, %v1007
        %v1010 = vmul.f32 %v980, %v1006
        %v1011 = vmul.f32 %v981, %v1007
        %v1012 = vmul.f32 %v982, %v1006
        %v1013 = vmul.f32 %v983, %v1007
        %v1014 = vmul.f32 %v984, %v1006
        %v1015 = vmul.f32 %v985, %v1007
        %v1016 = vld [vmem:[%s5] sm:$0xff]
        %v1017 = vld [vmem:[%s5 + $0x8] sm:$0xff]
        %v1018 = vadd.f32 %v1008, %v1016
        %v1019 = vadd.f32 %v1009, %v1017
        %v1020 = vadd.f32 %v1010, %v1016
        %v1021 = vadd.f32 %v1011, %v1017
        %v1022 = vadd.f32 %v1012, %v1016
        %v1023 = vadd.f32 %v1013, %v1017
        %v1024 = vadd.f32 %v1014, %v1016
        %v1025 = vadd.f32 %v1015, %v1017
        %v1026 = vld [vmem:[#allocation10] sm:$0xff]
        %v1027 = vld [vmem:[#allocation10 + $0x8] sm:$0xff]
        %v1028 = vld [vmem:[#allocation10 + $0x10] sm:$0xff]
        %v1029 = vld [vmem:[#allocation10 + $0x18] sm:$0xff]
        %v1030 = vld [vmem:[#allocation10 + $0x20] sm:$0xff]
        %v1031 = vld [vmem:[#allocation10 + $0x28] sm:$0xff]
        %v1032 = vld [vmem:[#allocation10 + $0x30] sm:$0xff]
        %v1033 = vld [vmem:[#allocation10 + $0x38] sm:$0xff]
        %v1034 = vld [vmem:[#allocation10 + $0x40] sm:$0xff]
        %v1035 = vld [vmem:[#allocation10 + $0x48] sm:$0xff]
        %v1036 = vld [vmem:[#allocation10 + $0x50] sm:$0xff]
        %v1037 = vld [vmem:[#allocation10 + $0x58] sm:$0xff]
        %v1038 = vld [vmem:[#allocation10 + $0x60] sm:$0xff]
        %v1039 = vld [vmem:[#allocation10 + $0x68] sm:$0xff]
        %v1040 = vld [vmem:[#allocation10 + $0x70] sm:$0xff]
        %v1041 = vld [vmem:[#allocation10 + $0x78] sm:$0xff]
        %v1042 = vld [vmem:[%s9] sm:$0x1]
        %v1044 = vlaneseq
        %v1045 = vshrl.u32 %v1044, 7
        %v1046 = vsub.s32 0, %v1045
        %v1047 = vrot.slane %v1042, %v1046
        %v1053 = vcombine.low %v992, %v993
        %v1054 = vcombine.low %v994, %v995
        %v1056 = vunpack.c.l.s4 1983009808
        %v1057 = vunpack.c.0.s8 %v1056
        %v1058 = vlaneseq
        %v1059 = vshrl.u32 %v1058, 7
        %v1060 = vsub.s32 %v1057, %v1059
        %v1061 = vrot.slane %v1053, %v1060
        %v1063 = vunpack.c.l.s4 1983009808
        %v1064 = vunpack.c.0.s8 %v1063
        %v1065 = vlaneseq
        %v1066 = vshrl.u32 %v1065, 7
        %v1067 = vsub.s32 %v1064, %v1066
        %v1068 = vrot.slane %v1054, %v1067
        %v1069 = vcombine.low %v1061, %v1068
        %1071 = vmatprep.subr.mxu0 0.0
        %1072 = vmatpush1.msra.mxu0 %v1026
        %1073 = vmatprep.subr.mxu0 0.0
        %1074 = vmatpush1.msra.mxu0 %v1027
        %1075 = vmatprep.subr.mxu0 0.0
        %1076 = vmatpush1.msra.mxu0 %v1028
        %1077 = vmatprep.subr.mxu0 0.0
        %1078 = vmatpush1.msra.mxu0 %v1029
        %1079 = vmatprep.subr.mxu0 0.0
        %1080 = vmatpush1.msra.mxu0 %v1030
        %1081 = vmatprep.subr.mxu0 0.0
        %1082 = vmatpush1.msra.mxu0 %v1031
        %1083 = vmatprep.subr.mxu0 0.0
        %1084 = vmatpush1.msra.mxu0 %v1032
        %1085 = vmatprep.subr.mxu0 0.0
        %1086 = vmatpush1.msra.mxu0 %v1033
        %1087 = vmatprep.subr.mxu0 0.0
        %1088 = vmatpush1.msra.mxu0 %v1034
        %1089 = vmatprep.subr.mxu0 0.0
        %1090 = vmatpush1.msra.mxu0 %v1035
        %1091 = vmatprep.subr.mxu0 0.0
        %1092 = vmatpush1.msra.mxu0 %v1036
        %1093 = vmatprep.subr.mxu0 0.0
        %1094 = vmatpush1.msra.mxu0 %v1037
        %1095 = vmatprep.subr.mxu0 0.0
        %1096 = vmatpush1.msra.mxu0 %v1038
        %1097 = vmatprep.subr.mxu0 0.0
        %1098 = vmatpush1.msra.mxu0 %v1039
        %1099 = vmatprep.subr.mxu0 0.0
        %1100 = vmatpush1.msra.mxu0 %v1040
        %1101 = vmatprep.subr.mxu0 0.0
        %1102 = vmatpush1.msra.mxu0 %v1041
        %1103 = vmatprep.subr.mxu0 0.0
        %1104 = vmatpush1.msra.mxu0 0.0
        %1105 = vmatprep.subr.mxu0 0.0
        %1106 = vmatpush1.msra.mxu0 0.0
        %1107 = vmatprep.subr.mxu0 0.0
        %1108 = vmatpush1.msra.mxu0 0.0
        %1109 = vmatprep.subr.mxu0 0.0
        %1110 = vmatpush1.msra.mxu0 0.0
        %1111 = vmatprep.subr.mxu0 0.0
        %1112 = vmatpush1.msra.mxu0 0.0
        %1113 = vmatprep.subr.mxu0 0.0
        %1114 = vmatpush1.msra.mxu0 0.0
        %1115 = vmatprep.subr.mxu0 0.0
        %1116 = vmatpush1.msra.mxu0 0.0
        %1117 = vmatprep.subr.mxu0 0.0
        %1118 = vmatpush1.msra.mxu0 0.0
        %1119 = vmatprep.subr.mxu0 0.0
        %1120 = vmatpush1.msra.mxu0 0.0
        %1121 = vmatprep.subr.mxu0 0.0
        %1122 = vmatpush1.msra.mxu0 0.0
        %1123 = vmatprep.subr.mxu0 0.0
        %1124 = vmatpush1.msra.mxu0 0.0
        %1125 = vmatprep.subr.mxu0 0.0
        %1126 = vmatpush1.msra.mxu0 0.0
        %1127 = vmatprep.subr.mxu0 0.0
        %1128 = vmatpush1.msra.mxu0 0.0
        %1129 = vmatprep.subr.mxu0 0.0
        %1130 = vmatpush1.msra.mxu0 0.0
        %1131 = vmatprep.subr.mxu0 0.0
        %1132 = vmatpush1.msra.mxu0 0.0
        %1133 = vmatprep.subr.mxu0 0.0
        %1134 = vmatpush1.msra.mxu0 0.0
        %1135 = vmatprep.mubr.f32.mxu0 0.0
        %1136 = vmatmul.mubr.f32.gmra.mrb[0].mxu0 %v1069
        %v1137 = vpop.f32.mrb[0].mxu0
        %v1138 = vadd.f32 %v1047, %v1137
        %v1139 = vpop.f32.mrb[0].mxu0
        %1140 = vdwg.mxu0
        %v1141 = vld [vmem:[#allocation11] sm:$0xff]
        %v1142 = vld [vmem:[#allocation11 + $0x8] sm:$0xff]
        %v1143 = vld [vmem:[#allocation11 + $0x10] sm:$0xff]
        %v1144 = vld [vmem:[#allocation11 + $0x18] sm:$0xff]
        %v1145 = vld [vmem:[#allocation11 + $0x20] sm:$0xff]
        %v1146 = vld [vmem:[#allocation11 + $0x28] sm:$0xff]
        %v1147 = vld [vmem:[#allocation11 + $0x30] sm:$0xff]
        %v1148 = vld [vmem:[#allocation11 + $0x38] sm:$0xff]
        %v1149 = vld [vmem:[#allocation11 + $0x40] sm:$0xff]
        %v1150 = vld [vmem:[#allocation11 + $0x48] sm:$0xff]
        %v1151 = vld [vmem:[#allocation11 + $0x50] sm:$0xff]
        %v1152 = vld [vmem:[#allocation11 + $0x58] sm:$0xff]
        %v1153 = vld [vmem:[#allocation11 + $0x60] sm:$0xff]
        %v1154 = vld [vmem:[#allocation11 + $0x68] sm:$0xff]
        %v1155 = vld [vmem:[#allocation11 + $0x70] sm:$0xff]
        %v1156 = vld [vmem:[#allocation11 + $0x78] sm:$0xff]
        %v1157 = vld [vmem:[#allocation11 + $0x80] sm:$0xff]
        %v1158 = vld [vmem:[#allocation11 + $0x88] sm:$0xff]
        %v1159 = vld [vmem:[#allocation11 + $0x90] sm:$0xff]
        %v1160 = vld [vmem:[#allocation11 + $0x98] sm:$0xff]
        %v1161 = vld [vmem:[#allocation11 + $0xa0] sm:$0xff]
        %v1162 = vld [vmem:[#allocation11 + $0xa8] sm:$0xff]
        %v1163 = vld [vmem:[#allocation11 + $0xb0] sm:$0xff]
        %v1164 = vld [vmem:[#allocation11 + $0xb8] sm:$0xff]
        %v1165 = vld [vmem:[#allocation11 + $0xc0] sm:$0xff]
        %v1166 = vld [vmem:[#allocation11 + $0xc8] sm:$0xff]
        %v1167 = vld [vmem:[#allocation11 + $0xd0] sm:$0xff]
        %v1168 = vld [vmem:[#allocation11 + $0xd8] sm:$0xff]
        %v1169 = vld [vmem:[#allocation11 + $0xe0] sm:$0xff]
        %v1170 = vld [vmem:[#allocation11 + $0xe8] sm:$0xff]
        %v1171 = vld [vmem:[#allocation11 + $0xf0] sm:$0xff]
        %v1172 = vld [vmem:[#allocation11 + $0xf8] sm:$0xff]
        %v1173 = vld [vmem:[%s11] sm:$0x3]
        %v1175 = vlaneseq
        %v1176 = vshrl.u32 %v1175, 7
        %v1177 = vsub.s32 0, %v1176
        %v1178 = vrot.slane %v1173, %v1177
        %v1179 = vlaneseq
        %v1180 = vshrl.u32 %v1179, 7
        %v1181 = vsub.s32 1, %v1180
        %v1182 = vrot.slane %v1173, %v1181
        %1185 = vmatprep.subr.mxu0 %v1142
        %1186 = vmatpush1.msra.mxu0 %v1141
        %1187 = vmatprep.subr.mxu0 %v1144
        %1188 = vmatpush1.msra.mxu0 %v1143
        %1189 = vmatprep.subr.mxu0 %v1146
        %1190 = vmatpush1.msra.mxu0 %v1145
        %1191 = vmatprep.subr.mxu0 %v1148
        %1192 = vmatpush1.msra.mxu0 %v1147
        %1193 = vmatprep.subr.mxu0 %v1150
        %1194 = vmatpush1.msra.mxu0 %v1149
        %1195 = vmatprep.subr.mxu0 %v1152
        %1196 = vmatpush1.msra.mxu0 %v1151
        %1197 = vmatprep.subr.mxu0 %v1154
        %1198 = vmatpush1.msra.mxu0 %v1153
        %1199 = vmatprep.subr.mxu0 %v1156
        %1200 = vmatpush1.msra.mxu0 %v1155
        %1201 = vmatprep.subr.mxu0 %v1158
        %1202 = vmatpush1.msra.mxu0 %v1157
        %1203 = vmatprep.subr.mxu0 %v1160
        %1204 = vmatpush1.msra.mxu0 %v1159
        %1205 = vmatprep.subr.mxu0 %v1162
        %1206 = vmatpush1.msra.mxu0 %v1161
        %1207 = vmatprep.subr.mxu0 %v1164
        %1208 = vmatpush1.msra.mxu0 %v1163
        %1209 = vmatprep.subr.mxu0 %v1166
        %1210 = vmatpush1.msra.mxu0 %v1165
        %1211 = vmatprep.subr.mxu0 %v1168
        %1212 = vmatpush1.msra.mxu0 %v1167
        %1213 = vmatprep.subr.mxu0 %v1170
        %1214 = vmatpush1.msra.mxu0 %v1169
        %1215 = vmatprep.subr.mxu0 %v1172
        %1216 = vmatpush1.msra.mxu0 %v1171
        %1217 = vmatprep.subr.mxu0 0.0
        %1218 = vmatpush1.msra.mxu0 0.0
        %1219 = vmatprep.subr.mxu0 0.0
        %1220 = vmatpush1.msra.mxu0 0.0
        %1221 = vmatprep.subr.mxu0 0.0
        %1222 = vmatpush1.msra.mxu0 0.0
        %1223 = vmatprep.subr.mxu0 0.0
        %1224 = vmatpush1.msra.mxu0 0.0
        %1225 = vmatprep.subr.mxu0 0.0
        %1226 = vmatpush1.msra.mxu0 0.0
        %1227 = vmatprep.subr.mxu0 0.0
        %1228 = vmatpush1.msra.mxu0 0.0
        %1229 = vmatprep.subr.mxu0 0.0
        %1230 = vmatpush1.msra.mxu0 0.0
        %1231 = vmatprep.subr.mxu0 0.0
        %1232 = vmatpush1.msra.mxu0 0.0
        %1233 = vmatprep.subr.mxu0 0.0
        %1234 = vmatpush1.msra.mxu0 0.0
        %1235 = vmatprep.subr.mxu0 0.0
        %1236 = vmatpush1.msra.mxu0 0.0
        %1237 = vmatprep.subr.mxu0 0.0
        %1238 = vmatpush1.msra.mxu0 0.0
        %1239 = vmatprep.subr.mxu0 0.0
        %1240 = vmatpush1.msra.mxu0 0.0
        %1241 = vmatprep.subr.mxu0 0.0
        %1242 = vmatpush1.msra.mxu0 0.0
        %1243 = vmatprep.subr.mxu0 0.0
        %1244 = vmatpush1.msra.mxu0 0.0
        %1245 = vmatprep.subr.mxu0 0.0
        %1246 = vmatpush1.msra.mxu0 0.0
        %1247 = vmatprep.subr.mxu0 0.0
        %1248 = vmatpush1.msra.mxu0 0.0
        %1249 = vmatprep.mubr.f32.mxu0 0.0
        %1250 = vmatmul.mubr.f32.gmra.mrb[0].mxu0 %v1018
        %v1251 = vpop.f32.mrb[0].mxu0
        %v1252 = vadd.f32 %v1178, %v1251
        %v1253 = vpop.f32.mrb[0].mxu0
        %v1254 = vadd.f32 %v1182, %v1253
        %1255 = vmatprep.mubr.f32.mxu0 0.0
        %1256 = vmatmul.mubr.f32.gmra.mrb[0].mxu0 %v1019
        %v1257 = vpop.f32.mrb[0].mxu0
        %v1258 = vadd.f32 %v1178, %v1257
        %v1259 = vpop.f32.mrb[0].mxu0
        %v1260 = vadd.f32 %v1182, %v1259
        %1261 = vmatprep.mubr.f32.mxu0 0.0
        %1262 = vmatmul.mubr.f32.gmra.mrb[0].mxu0 %v1020
        %v1263 = vpop.f32.mrb[0].mxu0
        %v1264 = vadd.f32 %v1178, %v1263
        %v1265 = vpop.f32.mrb[0].mxu0
        %v1266 = vadd.f32 %v1182, %v1265
        %1267 = vmatprep.mubr.f32.mxu0 0.0
        %1268 = vmatmul.mubr.f32.gmra.mrb[0].mxu0 %v1021
        %v1269 = vpop.f32.mrb[0].mxu0
        %v1270 = vadd.f32 %v1178, %v1269
        %v1271 = vpop.f32.mrb[0].mxu0
        %v1272 = vadd.f32 %v1182, %v1271
        %1273 = vmatprep.mubr.f32.mxu0 0.0
        %1274 = vmatmul.mubr.f32.gmra.mrb[0].mxu0 %v1022
        %v1275 = vpop.f32.mrb[0].mxu0
        %v1276 = vadd.f32 %v1178, %v1275
        %v1277 = vpop.f32.mrb[0].mxu0
        %v1278 = vadd.f32 %v1182, %v1277
        %1279 = vmatprep.mubr.f32.mxu0 0.0
        %1280 = vmatmul.mubr.f32.gmra.mrb[0].mxu0 %v1023
        %v1281 = vpop.f32.mrb[0].mxu0
        %v1282 = vadd.f32 %v1178, %v1281
        %v1283 = vpop.f32.mrb[0].mxu0
        %v1284 = vadd.f32 %v1182, %v1283
        %1285 = vmatprep.mubr.f32.mxu0 0.0
        %1286 = vmatmul.mubr.f32.gmra.mrb[0].mxu0 %v1024
        %v1287 = vpop.f32.mrb[0].mxu0
        %v1288 = vadd.f32 %v1178, %v1287
        %v1289 = vpop.f32.mrb[0].mxu0
        %v1290 = vadd.f32 %v1182, %v1289
        %1291 = vmatprep.mubr.f32.mxu0 0.0
        %1292 = vmatmul.mubr.f32.gmra.mrb[0].mxu0 %v1025
        %v1293 = vpop.f32.mrb[0].mxu0
        %v1294 = vadd.f32 %v1178, %v1293
        %v1295 = vpop.f32.mrb[0].mxu0
        %v1296 = vadd.f32 %v1182, %v1295
        %1297 = vdwg.mxu0
        %v1299 = vcombine.high %v1138, %v1138
        %v1301 = vunpack.c.l.s4 1983009808
        %v1302 = vunpack.c.0.s8 %v1301
        %v1303 = vlaneseq
        %v1304 = vshrl.u32 %v1303, 7
        %v1305 = vsub.s32 %v1302, %v1304
        %v1306 = vrot.slane %v1138, %v1305
        %v1308 = vunpack.c.l.s4 1983009808
        %v1309 = vunpack.c.0.s8 %v1308
        %v1310 = vlaneseq
        %v1311 = vshrl.u32 %v1310, 7
        %v1312 = vsub.s32 %v1309, %v1311
        %v1313 = vrot.slane %v1299, %v1312
        %v1314 = vcombine.high %v1306, %v1306
        %v1315 = vcombine.high %v1313, %v1313
        %1320 = vmatprep.subr.mxu0 0.0
        %1321 = vmatpush1.xpose.msra.mxu0 %v1252
        %1322 = vmatprep.subr.mxu0 0.0
        %1323 = vmatpush1.xpose.msra.mxu0 %v1258
        %1324 = vmatprep.subr.mxu0 0.0
        %1325 = vmatpush1.xpose.msra.mxu0 0.0
        %1326 = vmatprep.subr.mxu0 0.0
        %1327 = vmatpush1.xpose.msra.mxu0 0.0
        %1328 = vmatprep.subr.mxu0 0.0
        %1329 = vmatpush1.xpose.msra.mxu0 0.0
        %1330 = vmatprep.subr.mxu0 0.0
        %1331 = vmatpush1.xpose.msra.mxu0 0.0
        %1332 = vmatprep.subr.mxu0 0.0
        %1333 = vmatpush1.xpose.msra.mxu0 0.0
        %1334 = vmatprep.subr.mxu0 0.0
        %1335 = vmatpush1.xpose.msra.mxu0 0.0
        %1336 = vmatprep.subr.mxu0 0.0
        %1337 = vmatpush1.xpose.msra.mxu0 0.0
        %1338 = vmatprep.subr.mxu0 0.0
        %1339 = vmatpush1.xpose.msra.mxu0 0.0
        %1340 = vmatprep.subr.mxu0 0.0
        %1341 = vmatpush1.xpose.msra.mxu0 0.0
        %1342 = vmatprep.subr.mxu0 0.0
        %1343 = vmatpush1.xpose.msra.mxu0 0.0
        %1344 = vmatprep.subr.mxu0 0.0
        %1345 = vmatpush1.xpose.msra.mxu0 0.0
        %1346 = vmatprep.subr.mxu0 0.0
        %1347 = vmatpush1.xpose.msra.mxu0 0.0
        %1348 = vmatprep.subr.mxu0 0.0
        %1349 = vmatpush1.xpose.msra.mxu0 0.0
        %1350 = vmatprep.subr.mxu0 0.0
        %1351 = vmatpush1.xpose.msra.mxu0 0.0
        %1352 = vmatprep.subr.mxu0 0.0
        %1353 = vmatpush1.xpose.msra.mxu0 0.0
        %1354 = vmatprep.subr.mxu0 0.0
        %1355 = vmatpush1.xpose.msra.mxu0 0.0
        %1356 = vmatprep.subr.mxu0 0.0
        %1357 = vmatpush1.xpose.msra.mxu0 0.0
        %1358 = vmatprep.subr.mxu0 0.0
        %1359 = vmatpush1.xpose.msra.mxu0 0.0
        %1360 = vmatprep.subr.mxu0 0.0
        %1361 = vmatpush1.xpose.msra.mxu0 0.0
        %1362 = vmatprep.subr.mxu0 0.0
        %1363 = vmatpush1.xpose.msra.mxu0 0.0
        %1364 = vmatprep.subr.mxu0 0.0
        %1365 = vmatpush1.xpose.msra.mxu0 0.0
        %1366 = vmatprep.subr.mxu0 0.0
        %1367 = vmatpush1.xpose.msra.mxu0 0.0
        %1368 = vmatprep.subr.mxu0 0.0
        %1369 = vmatpush1.xpose.msra.mxu0 0.0
        %1370 = vmatprep.subr.mxu0 0.0
        %1371 = vmatpush1.xpose.msra.mxu0 0.0
        %1372 = vmatprep.subr.mxu0 0.0
        %1373 = vmatpush1.xpose.msra.mxu0 0.0
        %1374 = vmatprep.subr.mxu0 0.0
        %1375 = vmatpush1.xpose.msra.mxu0 0.0
        %1376 = vmatprep.subr.mxu0 0.0
        %1377 = vmatpush1.xpose.msra.mxu0 0.0
        %1378 = vmatprep.subr.mxu0 0.0
        %1379 = vmatpush1.xpose.msra.mxu0 0.0
        %1380 = vmatprep.subr.mxu0 0.0
        %1381 = vmatpush1.xpose.msra.mxu0 0.0
        %1382 = vmatprep.subr.mxu0 0.0
        %1383 = vmatpush1.xpose.msra.mxu0 0.0
        %1384 = vmatprep.mubr.f32.mxu0 0.0
        %1385 = vmatmul.mubr.f32.gmra.mrb[0].mxu0 %v1306
        %v1386 = vpop.f32.mrb[0].mxu0
        %v1387 = vadd.f32 0.0, %v1386
        %v1388 = vpop.f32.mrb[0].mxu0
        %1389 = vdwg.mxu0
        %1390 = vmatprep.subr.mxu0 0.0
        %1391 = vmatpush1.xpose.msra.mxu0 %v1264
        %1392 = vmatprep.subr.mxu0 0.0
        %1393 = vmatpush1.xpose.msra.mxu0 %v1270
        %1394 = vmatprep.subr.mxu0 0.0
        %1395 = vmatpush1.xpose.msra.mxu0 0.0
        %1396 = vmatprep.subr.mxu0 0.0
        %1397 = vmatpush1.xpose.msra.mxu0 0.0
        %1398 = vmatprep.subr.mxu0 0.0
        %1399 = vmatpush1.xpose.msra.mxu0 0.0
        %1400 = vmatprep.subr.mxu0 0.0
        %1401 = vmatpush1.xpose.msra.mxu0 0.0
        %1402 = vmatprep.subr.mxu0 0.0
        %1403 = vmatpush1.xpose.msra.mxu0 0.0
        %1404 = vmatprep.subr.mxu0 0.0
        %1405 = vmatpush1.xpose.msra.mxu0 0.0
        %1406 = vmatprep.subr.mxu0 0.0
        %1407 = vmatpush1.xpose.msra.mxu0 0.0
        %1408 = vmatprep.subr.mxu0 0.0
        %1409 = vmatpush1.xpose.msra.mxu0 0.0
        %1410 = vmatprep.subr.mxu0 0.0
        %1411 = vmatpush1.xpose.msra.mxu0 0.0
        %1412 = vmatprep.subr.mxu0 0.0
        %1413 = vmatpush1.xpose.msra.mxu0 0.0
        %1414 = vmatprep.subr.mxu0 0.0
        %1415 = vmatpush1.xpose.msra.mxu0 0.0
        %1416 = vmatprep.subr.mxu0 0.0
        %1417 = vmatpush1.xpose.msra.mxu0 0.0
        %1418 = vmatprep.subr.mxu0 0.0
        %1419 = vmatpush1.xpose.msra.mxu0 0.0
        %1420 = vmatprep.subr.mxu0 0.0
        %1421 = vmatpush1.xpose.msra.mxu0 0.0
        %1422 = vmatprep.subr.mxu0 0.0
        %1423 = vmatpush1.xpose.msra.mxu0 0.0
        %1424 = vmatprep.subr.mxu0 0.0
        %1425 = vmatpush1.xpose.msra.mxu0 0.0
        %1426 = vmatprep.subr.mxu0 0.0
        %1427 = vmatpush1.xpose.msra.mxu0 0.0
        %1428 = vmatprep.subr.mxu0 0.0
        %1429 = vmatpush1.xpose.msra.mxu0 0.0
        %1430 = vmatprep.subr.mxu0 0.0
        %1431 = vmatpush1.xpose.msra.mxu0 0.0
        %1432 = vmatprep.subr.mxu0 0.0
        %1433 = vmatpush1.xpose.msra.mxu0 0.0
        %1434 = vmatprep.subr.mxu0 0.0
        %1435 = vmatpush1.xpose.msra.mxu0 0.0
        %1436 = vmatprep.subr.mxu0 0.0
        %1437 = vmatpush1.xpose.msra.mxu0 0.0
        %1438 = vmatprep.subr.mxu0 0.0
        %1439 = vmatpush1.xpose.msra.mxu0 0.0
        %1440 = vmatprep.subr.mxu0 0.0
        %1441 = vmatpush1.xpose.msra.mxu0 0.0
        %1442 = vmatprep.subr.mxu0 0.0
        %1443 = vmatpush1.xpose.msra.mxu0 0.0
        %1444 = vmatprep.subr.mxu0 0.0
        %1445 = vmatpush1.xpose.msra.mxu0 0.0
        %1446 = vmatprep.subr.mxu0 0.0
        %1447 = vmatpush1.xpose.msra.mxu0 0.0
        %1448 = vmatprep.subr.mxu0 0.0
        %1449 = vmatpush1.xpose.msra.mxu0 0.0
        %1450 = vmatprep.subr.mxu0 0.0
        %1451 = vmatpush1.xpose.msra.mxu0 0.0
        %1452 = vmatprep.subr.mxu0 0.0
        %1453 = vmatpush1.xpose.msra.mxu0 0.0
        %1454 = vmatprep.mubr.f32.mxu0 0.0
        %1455 = vmatmul.mubr.f32.gmra.mrb[0].mxu0 %v1314
        %v1456 = vpop.f32.mrb[0].mxu0
        %v1457 = vadd.f32 0.0, %v1456
        %v1458 = vpop.f32.mrb[0].mxu0
        %1459 = vdwg.mxu0
        %1460 = vmatprep.subr.mxu0 0.0
        %1461 = vmatpush1.xpose.msra.mxu0 %v1276
        %1462 = vmatprep.subr.mxu0 0.0
        %1463 = vmatpush1.xpose.msra.mxu0 %v1282
        %1464 = vmatprep.subr.mxu0 0.0
        %1465 = vmatpush1.xpose.msra.mxu0 0.0
        %1466 = vmatprep.subr.mxu0 0.0
        %1467 = vmatpush1.xpose.msra.mxu0 0.0
        %1468 = vmatprep.subr.mxu0 0.0
        %1469 = vmatpush1.xpose.msra.mxu0 0.0
        %1470 = vmatprep.subr.mxu0 0.0
        %1471 = vmatpush1.xpose.msra.mxu0 0.0
        %1472 = vmatprep.subr.mxu0 0.0
        %1473 = vmatpush1.xpose.msra.mxu0 0.0
        %1474 = vmatprep.subr.mxu0 0.0
        %1475 = vmatpush1.xpose.msra.mxu0 0.0
        %1476 = vmatprep.subr.mxu0 0.0
        %1477 = vmatpush1.xpose.msra.mxu0 0.0
        %1478 = vmatprep.subr.mxu0 0.0
        %1479 = vmatpush1.xpose.msra.mxu0 0.0
        %1480 = vmatprep.subr.mxu0 0.0
        %1481 = vmatpush1.xpose.msra.mxu0 0.0
        %1482 = vmatprep.subr.mxu0 0.0
        %1483 = vmatpush1.xpose.msra.mxu0 0.0
        %1484 = vmatprep.subr.mxu0 0.0
        %1485 = vmatpush1.xpose.msra.mxu0 0.0
        %1486 = vmatprep.subr.mxu0 0.0
        %1487 = vmatpush1.xpose.msra.mxu0 0.0
        %1488 = vmatprep.subr.mxu0 0.0
        %1489 = vmatpush1.xpose.msra.mxu0 0.0
        %1490 = vmatprep.subr.mxu0 0.0
        %1491 = vmatpush1.xpose.msra.mxu0 0.0
        %1492 = vmatprep.subr.mxu0 0.0
        %1493 = vmatpush1.xpose.msra.mxu0 0.0
        %1494 = vmatprep.subr.mxu0 0.0
        %1495 = vmatpush1.xpose.msra.mxu0 0.0
        %1496 = vmatprep.subr.mxu0 0.0
        %1497 = vmatpush1.xpose.msra.mxu0 0.0
        %1498 = vmatprep.subr.mxu0 0.0
        %1499 = vmatpush1.xpose.msra.mxu0 0.0
        %1500 = vmatprep.subr.mxu0 0.0
        %1501 = vmatpush1.xpose.msra.mxu0 0.0
        %1502 = vmatprep.subr.mxu0 0.0
        %1503 = vmatpush1.xpose.msra.mxu0 0.0
        %1504 = vmatprep.subr.mxu0 0.0
        %1505 = vmatpush1.xpose.msra.mxu0 0.0
        %1506 = vmatprep.subr.mxu0 0.0
        %1507 = vmatpush1.xpose.msra.mxu0 0.0
        %1508 = vmatprep.subr.mxu0 0.0
        %1509 = vmatpush1.xpose.msra.mxu0 0.0
        %1510 = vmatprep.subr.mxu0 0.0
        %1511 = vmatpush1.xpose.msra.mxu0 0.0
        %1512 = vmatprep.subr.mxu0 0.0
        %1513 = vmatpush1.xpose.msra.mxu0 0.0
        %1514 = vmatprep.subr.mxu0 0.0
        %1515 = vmatpush1.xpose.msra.mxu0 0.0
        %1516 = vmatprep.subr.mxu0 0.0
        %1517 = vmatpush1.xpose.msra.mxu0 0.0
        %1518 = vmatprep.subr.mxu0 0.0
        %1519 = vmatpush1.xpose.msra.mxu0 0.0
        %1520 = vmatprep.subr.mxu0 0.0
        %1521 = vmatpush1.xpose.msra.mxu0 0.0
        %1522 = vmatprep.subr.mxu0 0.0
        %1523 = vmatpush1.xpose.msra.mxu0 0.0
        %1524 = vmatprep.mubr.f32.mxu0 0.0
        %1525 = vmatmul.mubr.f32.gmra.mrb[0].mxu0 %v1313
        %v1526 = vpop.f32.mrb[0].mxu0
        %v1527 = vadd.f32 0.0, %v1526
        %v1528 = vpop.f32.mrb[0].mxu0
        %1529 = vdwg.mxu0
        %1530 = vmatprep.subr.mxu0 0.0
        %1531 = vmatpush1.xpose.msra.mxu0 %v1288
        %1532 = vmatprep.subr.mxu0 0.0
        %1533 = vmatpush1.xpose.msra.mxu0 %v1294
        %1534 = vmatprep.subr.mxu0 0.0
        %1535 = vmatpush1.xpose.msra.mxu0 0.0
        %1536 = vmatprep.subr.mxu0 0.0
        %1537 = vmatpush1.xpose.msra.mxu0 0.0
        %1538 = vmatprep.subr.mxu0 0.0
        %1539 = vmatpush1.xpose.msra.mxu0 0.0
        %1540 = vmatprep.subr.mxu0 0.0
        %1541 = vmatpush1.xpose.msra.mxu0 0.0
        %1542 = vmatprep.subr.mxu0 0.0
        %1543 = vmatpush1.xpose.msra.mxu0 0.0
        %1544 = vmatprep.subr.mxu0 0.0
        %1545 = vmatpush1.xpose.msra.mxu0 0.0
        %1546 = vmatprep.subr.mxu0 0.0
        %1547 = vmatpush1.xpose.msra.mxu0 0.0
        %1548 = vmatprep.subr.mxu0 0.0
        %1549 = vmatpush1.xpose.msra.mxu0 0.0
        %1550 = vmatprep.subr.mxu0 0.0
        %1551 = vmatpush1.xpose.msra.mxu0 0.0
        %1552 = vmatprep.subr.mxu0 0.0
        %1553 = vmatpush1.xpose.msra.mxu0 0.0
        %1554 = vmatprep.subr.mxu0 0.0
        %1555 = vmatpush1.xpose.msra.mxu0 0.0
        %1556 = vmatprep.subr.mxu0 0.0
        %1557 = vmatpush1.xpose.msra.mxu0 0.0
        %1558 = vmatprep.subr.mxu0 0.0
        %1559 = vmatpush1.xpose.msra.mxu0 0.0
        %1560 = vmatprep.subr.mxu0 0.0
        %1561 = vmatpush1.xpose.msra.mxu0 0.0
        %1562 = vmatprep.subr.mxu0 0.0
        %1563 = vmatpush1.xpose.msra.mxu0 0.0
        %1564 = vmatprep.subr.mxu0 0.0
        %1565 = vmatpush1.xpose.msra.mxu0 0.0
        %1566 = vmatprep.subr.mxu0 0.0
        %1567 = vmatpush1.xpose.msra.mxu0 0.0
        %1568 = vmatprep.subr.mxu0 0.0
        %1569 = vmatpush1.xpose.msra.mxu0 0.0
        %1570 = vmatprep.subr.mxu0 0.0
        %1571 = vmatpush1.xpose.msra.mxu0 0.0
        %1572 = vmatprep.subr.mxu0 0.0
        %1573 = vmatpush1.xpose.msra.mxu0 0.0
        %1574 = vmatprep.subr.mxu0 0.0
        %1575 = vmatpush1.xpose.msra.mxu0 0.0
        %1576 = vmatprep.subr.mxu0 0.0
        %1577 = vmatpush1.xpose.msra.mxu0 0.0
        %1578 = vmatprep.subr.mxu0 0.0
        %1579 = vmatpush1.xpose.msra.mxu0 0.0
        %1580 = vmatprep.subr.mxu0 0.0
        %1581 = vmatpush1.xpose.msra.mxu0 0.0
        %1582 = vmatprep.subr.mxu0 0.0
        %1583 = vmatpush1.xpose.msra.mxu0 0.0
        %1584 = vmatprep.subr.mxu0 0.0
        %1585 = vmatpush1.xpose.msra.mxu0 0.0
        %1586 = vmatprep.subr.mxu0 0.0
        %1587 = vmatpush1.xpose.msra.mxu0 0.0
        %1588 = vmatprep.subr.mxu0 0.0
        %1589 = vmatpush1.xpose.msra.mxu0 0.0
        %1590 = vmatprep.subr.mxu0 0.0
        %1591 = vmatpush1.xpose.msra.mxu0 0.0
        %1592 = vmatprep.subr.mxu0 0.0
        %1593 = vmatpush1.xpose.msra.mxu0 0.0
        %1594 = vmatprep.mubr.f32.mxu0 0.0
        %1595 = vmatmul.mubr.f32.gmra.mrb[0].mxu0 %v1315
        %v1596 = vpop.f32.mrb[0].mxu0
        %v1597 = vadd.f32 0.0, %v1596
        %v1598 = vpop.f32.mrb[0].mxu0
        %1599 = vdwg.mxu0
        %vm1600 = vcmask 123904
        %v1601 = vsel %vm1600, %v1387, -inf
        %1602 = vmax.xlane.f32.xlu0 %v1601
        %v1603 = vpop.xlane.xlu0 %1602
        %v1604 = vsel %vm1600, %v1457, -inf
        %1605 = vmax.xlane.f32.xlu0 %v1604
        %v1606 = vpop.xlane.xlu0 %1605
        %v1607 = vsel %vm1600, %v1527, -inf
        %1608 = vmax.xlane.f32.xlu0 %v1607
        %v1609 = vpop.xlane.xlu0 %1608
        %v1610 = vsel %vm1600, %v1597, -inf
        %1611 = vmax.xlane.f32.xlu0 %v1610
        %v1612 = vpop.xlane.xlu0 %1611
        %v1613 = vsub.f32 %v1387, %v1603
        %v1614 = vsub.f32 %v1457, %v1606
        %v1615 = vsub.f32 %v1527, %v1609
        %v1616 = vsub.f32 %v1597, %v1612
        %v1617 = vmul.f32 %v1613, 1.442695
        %v1618 = vpow.pop %v1617
        %v1619 = vmul.f32 %v1614, 1.442695
        %v1620 = vpow.pop %v1619
        %v1621 = vmul.f32 %v1615, 1.442695
        %v1622 = vpow.pop %v1621
        %v1623 = vmul.f32 %v1616, 1.442695
        %v1624 = vpow.pop %v1623
        %v1625 = vsel %vm1600, %v1618, 0.0
        %1626 = vadd.xlane.f32.xlu0 %v1625
        %v1627 = vpop.xlane.xlu0 %1626
        %v1628 = vsel %vm1600, %v1620, 0.0
        %1629 = vadd.xlane.f32.xlu0 %v1628
        %v1630 = vpop.xlane.xlu0 %1629
        %v1631 = vsel %vm1600, %v1622, 0.0
        %1632 = vadd.xlane.f32.xlu0 %v1631
        %v1633 = vpop.xlane.xlu0 %1632
        %v1634 = vsel %vm1600, %v1624, 0.0
        %1635 = vadd.xlane.f32.xlu0 %v1634
        %v1636 = vpop.xlane.xlu0 %1635
        %v1637 = vrcp.pop %v1627
        %v1638 = vrcp.pop %v1630
        %v1639 = vrcp.pop %v1633
        %v1640 = vrcp.pop %v1636
        %v1641 = vmul.f32 %v1618, %v1637
        %v1642 = vmul.f32 %v1620, %v1638
        %v1643 = vmul.f32 %v1622, %v1639
        %v1644 = vmul.f32 %v1624, %v1640
        %vm1645 = vcmask 130048
        %v1647 = vsel %vm1645, %v1641, 0
        %1649 = vmatprep.subr.mxu0 0.0
        %1650 = vmatpush1.msra.mxu0 %v1254
        %1651 = vmatprep.subr.mxu0 0.0
        %1652 = vmatpush1.msra.mxu0 %v1260
        %1653 = vmatprep.subr.mxu0 0.0
        %1654 = vmatpush1.msra.mxu0 0.0
        %1655 = vmatprep.subr.mxu0 0.0
        %1656 = vmatpush1.msra.mxu0 0.0
        %1657 = vmatprep.subr.mxu0 0.0
        %1658 = vmatpush1.msra.mxu0 0.0
        %1659 = vmatprep.subr.mxu0 0.0
        %1660 = vmatpush1.msra.mxu0 0.0
        %1661 = vmatprep.subr.mxu0 0.0
        %1662 = vmatpush1.msra.mxu0 0.0
        %1663 = vmatprep.subr.mxu0 0.0
        %1664 = vmatpush1.msra.mxu0 0.0
        %1665 = vmatprep.subr.mxu0 0.0
        %1666 = vmatpush1.msra.mxu0 0.0
        %1667 = vmatprep.subr.mxu0 0.0
        %1668 = vmatpush1.msra.mxu0 0.0
        %1669 = vmatprep.subr.mxu0 0.0
        %1670 = vmatpush1.msra.mxu0 0.0
        %1671 = vmatprep.subr.mxu0 0.0
        %1672 = vmatpush1.msra.mxu0 0.0
        %1673 = vmatprep.subr.mxu0 0.0
        %1674 = vmatpush1.msra.mxu0 0.0
        %1675 = vmatprep.subr.mxu0 0.0
        %1676 = vmatpush1.msra.mxu0 0.0
        %1677 = vmatprep.subr.mxu0 0.0
        %1678 = vmatpush1.msra.mxu0 0.0
        %1679 = vmatprep.subr.mxu0 0.0
        %1680 = vmatpush1.msra.mxu0 0.0
        %1681 = vmatprep.subr.mxu0 0.0
        %1682 = vmatpush1.msra.mxu0 0.0
        %1683 = vmatprep.subr.mxu0 0.0
        %1684 = vmatpush1.msra.mxu0 0.0
        %1685 = vmatprep.subr.mxu0 0.0
        %1686 = vmatpush1.msra.mxu0 0.0
        %1687 = vmatprep.subr.mxu0 0.0
        %1688 = vmatpush1.msra.mxu0 0.0
        %1689 = vmatprep.subr.mxu0 0.0
        %1690 = vmatpush1.msra.mxu0 0.0
        %1691 = vmatprep.subr.mxu0 0.0
        %1692 = vmatpush1.msra.mxu0 0.0
        %1693 = vmatprep.subr.mxu0 0.0
        %1694 = vmatpush1.msra.mxu0 0.0
        %1695 = vmatprep.subr.mxu0 0.0
        %1696 = vmatpush1.msra.mxu0 0.0
        %1697 = vmatprep.subr.mxu0 0.0
        %1698 = vmatpush1.msra.mxu0 0.0
        %1699 = vmatprep.subr.mxu0 0.0
        %1700 = vmatpush1.msra.mxu0 0.0
        %1701 = vmatprep.subr.mxu0 0.0
        %1702 = vmatpush1.msra.mxu0 0.0
        %1703 = vmatprep.subr.mxu0 0.0
        %1704 = vmatpush1.msra.mxu0 0.0
        %1705 = vmatprep.subr.mxu0 0.0
        %1706 = vmatpush1.msra.mxu0 0.0
        %1707 = vmatprep.subr.mxu0 0.0
        %1708 = vmatpush1.msra.mxu0 0.0
        %1709 = vmatprep.subr.mxu0 0.0
        %1710 = vmatpush1.msra.mxu0 0.0
        %1711 = vmatprep.subr.mxu0 0.0
        %1712 = vmatpush1.msra.mxu0 0.0
        %1713 = vmatprep.mubr.f32.mxu0 0.0
        %1714 = vmatmul.mubr.f32.gmra.mrb[0].mxu0 %v1647
        %v1715 = vpop.f32.mrb[0].mxu0
        %v1716 = vadd.f32 0.0, %v1715
        %v1717 = vpop.f32.mrb[0].mxu0
        %1718 = vdwg.mxu0
        %v1720 = vsel %vm1645, %v1642, 0
        %1722 = vmatprep.subr.mxu0 0.0
        %1723 = vmatpush1.msra.mxu0 %v1266
        %1724 = vmatprep.subr.mxu0 0.0
        %1725 = vmatpush1.msra.mxu0 %v1272
        %1726 = vmatprep.subr.mxu0 0.0
        %1727 = vmatpush1.msra.mxu0 0.0
        %1728 = vmatprep.subr.mxu0 0.0
        %1729 = vmatpush1.msra.mxu0 0.0
        %1730 = vmatprep.subr.mxu0 0.0
        %1731 = vmatpush1.msra.mxu0 0.0
        %1732 = vmatprep.subr.mxu0 0.0
        %1733 = vmatpush1.msra.mxu0 0.0
        %1734 = vmatprep.subr.mxu0 0.0
        %1735 = vmatpush1.msra.mxu0 0.0
        %1736 = vmatprep.subr.mxu0 0.0
        %1737 = vmatpush1.msra.mxu0 0.0
        %1738 = vmatprep.subr.mxu0 0.0
        %1739 = vmatpush1.msra.mxu0 0.0
        %1740 = vmatprep.subr.mxu0 0.0
        %1741 = vmatpush1.msra.mxu0 0.0
        %1742 = vmatprep.subr.mxu0 0.0
        %1743 = vmatpush1.msra.mxu0 0.0
        %1744 = vmatprep.subr.mxu0 0.0
        %1745 = vmatpush1.msra.mxu0 0.0
        %1746 = vmatprep.subr.mxu0 0.0
        %1747 = vmatpush1.msra.mxu0 0.0
        %1748 = vmatprep.subr.mxu0 0.0
        %1749 = vmatpush1.msra.mxu0 0.0
        %1750 = vmatprep.subr.mxu0 0.0
        %1751 = vmatpush1.msra.mxu0 0.0
        %1752 = vmatprep.subr.mxu0 0.0
        %1753 = vmatpush1.msra.mxu0 0.0
        %1754 = vmatprep.subr.mxu0 0.0
        %1755 = vmatpush1.msra.mxu0 0.0
        %1756 = vmatprep.subr.mxu0 0.0
        %1757 = vmatpush1.msra.mxu0 0.0
        %1758 = vmatprep.subr.mxu0 0.0
        %1759 = vmatpush1.msra.mxu0 0.0
        %1760 = vmatprep.subr.mxu0 0.0
        %1761 = vmatpush1.msra.mxu0 0.0
        %1762 = vmatprep.subr.mxu0 0.0
        %1763 = vmatpush1.msra.mxu0 0.0
        %1764 = vmatprep.subr.mxu0 0.0
        %1765 = vmatpush1.msra.mxu0 0.0
        %1766 = vmatprep.subr.mxu0 0.0
        %1767 = vmatpush1.msra.mxu0 0.0
        %1768 = vmatprep.subr.mxu0 0.0
        %1769 = vmatpush1.msra.mxu0 0.0
        %1770 = vmatprep.subr.mxu0 0.0
        %1771 = vmatpush1.msra.mxu0 0.0
        %1772 = vmatprep.subr.mxu0 0.0
        %1773 = vmatpush1.msra.mxu0 0.0
        %1774 = vmatprep.subr.mxu0 0.0
        %1775 = vmatpush1.msra.mxu0 0.0
        %1776 = vmatprep.subr.mxu0 0.0
        %1777 = vmatpush1.msra.mxu0 0.0
        %1778 = vmatprep.subr.mxu0 0.0
        %1779 = vmatpush1.msra.mxu0 0.0
        %1780 = vmatprep.subr.mxu0 0.0
        %1781 = vmatpush1.msra.mxu0 0.0
        %1782 = vmatprep.subr.mxu0 0.0
        %1783 = vmatpush1.msra.mxu0 0.0
        %1784 = vmatprep.subr.mxu0 0.0
        %1785 = vmatpush1.msra.mxu0 0.0
        %1786 = vmatprep.mubr.f32.mxu0 0.0
        %1787 = vmatmul.mubr.f32.gmra.mrb[0].mxu0 %v1720
        %v1788 = vpop.f32.mrb[0].mxu0
        %v1789 = vadd.f32 0.0, %v1788
        %v1790 = vpop.f32.mrb[0].mxu0
        %1791 = vdwg.mxu0
        %v1793 = vsel %vm1645, %v1643, 0
        %1795 = vmatprep.subr.mxu0 0.0
        %1796 = vmatpush1.msra.mxu0 %v1278
        %1797 = vmatprep.subr.mxu0 0.0
        %1798 = vmatpush1.msra.mxu0 %v1284
        %1799 = vmatprep.subr.mxu0 0.0
        %1800 = vmatpush1.msra.mxu0 0.0
        %1801 = vmatprep.subr.mxu0 0.0
        %1802 = vmatpush1.msra.mxu0 0.0
        %1803 = vmatprep.subr.mxu0 0.0
        %1804 = vmatpush1.msra.mxu0 0.0
        %1805 = vmatprep.subr.mxu0 0.0
        %1806 = vmatpush1.msra.mxu0 0.0
        %1807 = vmatprep.subr.mxu0 0.0
        %1808 = vmatpush1.msra.mxu0 0.0
        %1809 = vmatprep.subr.mxu0 0.0
        %1810 = vmatpush1.msra.mxu0 0.0
        %1811 = vmatprep.subr.mxu0 0.0
        %1812 = vmatpush1.msra.mxu0 0.0
        %1813 = vmatprep.subr.mxu0 0.0
        %1814 = vmatpush1.msra.mxu0 0.0
        %1815 = vmatprep.subr.mxu0 0.0
        %1816 = vmatpush1.msra.mxu0 0.0
        %1817 = vmatprep.subr.mxu0 0.0
        %1818 = vmatpush1.msra.mxu0 0.0
        %1819 = vmatprep.subr.mxu0 0.0
        %1820 = vmatpush1.msra.mxu0 0.0
        %1821 = vmatprep.subr.mxu0 0.0
        %1822 = vmatpush1.msra.mxu0 0.0
        %1823 = vmatprep.subr.mxu0 0.0
        %1824 = vmatpush1.msra.mxu0 0.0
        %1825 = vmatprep.subr.mxu0 0.0
        %1826 = vmatpush1.msra.mxu0 0.0
        %1827 = vmatprep.subr.mxu0 0.0
        %1828 = vmatpush1.msra.mxu0 0.0
        %1829 = vmatprep.subr.mxu0 0.0
        %1830 = vmatpush1.msra.mxu0 0.0
        %1831 = vmatprep.subr.mxu0 0.0
        %1832 = vmatpush1.msra.mxu0 0.0
        %1833 = vmatprep.subr.mxu0 0.0
        %1834 = vmatpush1.msra.mxu0 0.0
        %1835 = vmatprep.subr.mxu0 0.0
        %1836 = vmatpush1.msra.mxu0 0.0
        %1837 = vmatprep.subr.mxu0 0.0
        %1838 = vmatpush1.msra.mxu0 0.0
        %1839 = vmatprep.subr.mxu0 0.0
        %1840 = vmatpush1.msra.mxu0 0.0
        %1841 = vmatprep.subr.mxu0 0.0
        %1842 = vmatpush1.msra.mxu0 0.0
        %1843 = vmatprep.subr.mxu0 0.0
        %1844 = vmatpush1.msra.mxu0 0.0
        %1845 = vmatprep.subr.mxu0 0.0
        %1846 = vmatpush1.msra.mxu0 0.0
        %1847 = vmatprep.subr.mxu0 0.0
        %1848 = vmatpush1.msra.mxu0 0.0
        %1849 = vmatprep.subr.mxu0 0.0
        %1850 = vmatpush1.msra.mxu0 0.0
        %1851 = vmatprep.subr.mxu0 0.0
        %1852 = vmatpush1.msra.mxu0 0.0
        %1853 = vmatprep.subr.mxu0 0.0
        %1854 = vmatpush1.msra.mxu0 0.0
        %1855 = vmatprep.subr.mxu0 0.0
        %1856 = vmatpush1.msra.mxu0 0.0
        %1857 = vmatprep.subr.mxu0 0.0
        %1858 = vmatpush1.msra.mxu0 0.0
        %1859 = vmatprep.mubr.f32.mxu0 0.0
        %1860 = vmatmul.mubr.f32.gmra.mrb[0].mxu0 %v1793
        %v1861 = vpop.f32.mrb[0].mxu0
        %v1862 = vadd.f32 0.0, %v1861
        %v1863 = vpop.f32.mrb[0].mxu0
        %1864 = vdwg.mxu0
        %v1866 = vsel %vm1645, %v1644, 0
        %1868 = vmatprep.subr.mxu0 0.0
        %1869 = vmatpush1.msra.mxu0 %v1290
        %1870 = vmatprep.subr.mxu0 0.0
        %1871 = vmatpush1.msra.mxu0 %v1296
        %1872 = vmatprep.subr.mxu0 0.0
        %1873 = vmatpush1.msra.mxu0 0.0
        %1874 = vmatprep.subr.mxu0 0.0
        %1875 = vmatpush1.msra.mxu0 0.0
        %1876 = vmatprep.subr.mxu0 0.0
        %1877 = vmatpush1.msra.mxu0 0.0
        %1878 = vmatprep.subr.mxu0 0.0
        %1879 = vmatpush1.msra.mxu0 0.0
        %1880 = vmatprep.subr.mxu0 0.0
        %1881 = vmatpush1.msra.mxu0 0.0
        %1882 = vmatprep.subr.mxu0 0.0
        %1883 = vmatpush1.msra.mxu0 0.0
        %1884 = vmatprep.subr.mxu0 0.0
        %1885 = vmatpush1.msra.mxu0 0.0
        %1886 = vmatprep.subr.mxu0 0.0
        %1887 = vmatpush1.msra.mxu0 0.0
        %1888 = vmatprep.subr.mxu0 0.0
        %1889 = vmatpush1.msra.mxu0 0.0
        %1890 = vmatprep.subr.mxu0 0.0
        %1891 = vmatpush1.msra.mxu0 0.0
        %1892 = vmatprep.subr.mxu0 0.0
        %1893 = vmatpush1.msra.mxu0 0.0
        %1894 = vmatprep.subr.mxu0 0.0
        %1895 = vmatpush1.msra.mxu0 0.0
        %1896 = vmatprep.subr.mxu0 0.0
        %1897 = vmatpush1.msra.mxu0 0.0
        %1898 = vmatprep.subr.mxu0 0.0
        %1899 = vmatpush1.msra.mxu0 0.0
        %1900 = vmatprep.subr.mxu0 0.0
        %1901 = vmatpush1.msra.mxu0 0.0
        %1902 = vmatprep.subr.mxu0 0.0
        %1903 = vmatpush1.msra.mxu0 0.0
        %1904 = vmatprep.subr.mxu0 0.0
        %1905 = vmatpush1.msra.mxu0 0.0
        %1906 = vmatprep.subr.mxu0 0.0
        %1907 = vmatpush1.msra.mxu0 0.0
        %1908 = vmatprep.subr.mxu0 0.0
        %1909 = vmatpush1.msra.mxu0 0.0
        %1910 = vmatprep.subr.mxu0 0.0
        %1911 = vmatpush1.msra.mxu0 0.0
        %1912 = vmatprep.subr.mxu0 0.0
        %1913 = vmatpush1.msra.mxu0 0.0
        %1914 = vmatprep.subr.mxu0 0.0
        %1915 = vmatpush1.msra.mxu0 0.0
        %1916 = vmatprep.subr.mxu0 0.0
        %1917 = vmatpush1.msra.mxu0 0.0
        %1918 = vmatprep.subr.mxu0 0.0
        %1919 = vmatpush1.msra.mxu0 0.0
        %1920 = vmatprep.subr.mxu0 0.0
        %1921 = vmatpush1.msra.mxu0 0.0
        %1922 = vmatprep.subr.mxu0 0.0
        %1923 = vmatpush1.msra.mxu0 0.0
        %1924 = vmatprep.subr.mxu0 0.0
        %1925 = vmatpush1.msra.mxu0 0.0
        %1926 = vmatprep.subr.mxu0 0.0
        %1927 = vmatpush1.msra.mxu0 0.0
        %1928 = vmatprep.subr.mxu0 0.0
        %1929 = vmatpush1.msra.mxu0 0.0
        %1930 = vmatprep.subr.mxu0 0.0
        %1931 = vmatpush1.msra.mxu0 0.0
        %1932 = vmatprep.mubr.f32.mxu0 0.0
        %1933 = vmatmul.mubr.f32.gmra.mrb[0].mxu0 %v1866
        %v1934 = vpop.f32.mrb[0].mxu0
        %v1935 = vadd.f32 0.0, %v1934
        %v1936 = vpop.f32.mrb[0].mxu0
        %1937 = vdwg.mxu0
        %v1938 = vld [vmem:[#allocation13] sm:$0xff]
        %v1939 = vld [vmem:[#allocation13 + $0x8] sm:$0xff]
        %v1940 = vld [vmem:[#allocation13 + $0x10] sm:$0xff]
        %v1941 = vld [vmem:[#allocation13 + $0x18] sm:$0xff]
        %v1942 = vld [vmem:[#allocation13 + $0x20] sm:$0xff]
        %v1943 = vld [vmem:[#allocation13 + $0x28] sm:$0xff]
        %v1944 = vld [vmem:[#allocation13 + $0x30] sm:$0xff]
        %v1945 = vld [vmem:[#allocation13 + $0x38] sm:$0xff]
        %v1946 = vld [vmem:[#allocation13 + $0x40] sm:$0xff]
        %v1947 = vld [vmem:[#allocation13 + $0x48] sm:$0xff]
        %v1948 = vld [vmem:[#allocation13 + $0x50] sm:$0xff]
        %v1949 = vld [vmem:[#allocation13 + $0x58] sm:$0xff]
        %v1950 = vld [vmem:[#allocation13 + $0x60] sm:$0xff]
        %v1951 = vld [vmem:[#allocation13 + $0x68] sm:$0xff]
        %v1952 = vld [vmem:[#allocation13 + $0x70] sm:$0xff]
        %v1953 = vld [vmem:[#allocation13 + $0x78] sm:$0xff]
        %v1958 = vcombine.low %v1716, %v1789
        %v1959 = vcombine.low %v1862, %v1935
        %v1961 = vunpack.c.l.s4 1983009808
        %v1962 = vunpack.c.0.s8 %v1961
        %v1963 = vlaneseq
        %v1964 = vshrl.u32 %v1963, 7
        %v1965 = vsub.s32 %v1962, %v1964
        %v1966 = vrot.slane %v1958, %v1965
        %v1968 = vunpack.c.l.s4 1983009808
        %v1969 = vunpack.c.0.s8 %v1968
        %v1970 = vlaneseq
        %v1971 = vshrl.u32 %v1970, 7
        %v1972 = vsub.s32 %v1969, %v1971
        %v1973 = vrot.slane %v1959, %v1972
        %v1974 = vcombine.low %v1966, %v1973
        %1976 = vmatprep.subr.mxu0 0.0
        %1977 = vmatpush1.msra.mxu0 %v1938
        %1978 = vmatprep.subr.mxu0 0.0
        %1979 = vmatpush1.msra.mxu0 %v1939
        %1980 = vmatprep.subr.mxu0 0.0
        %1981 = vmatpush1.msra.mxu0 %v1940
        %1982 = vmatprep.subr.mxu0 0.0
        %1983 = vmatpush1.msra.mxu0 %v1941
        %1984 = vmatprep.subr.mxu0 0.0
        %1985 = vmatpush1.msra.mxu0 %v1942
        %1986 = vmatprep.subr.mxu0 0.0
        %1987 = vmatpush1.msra.mxu0 %v1943
        %1988 = vmatprep.subr.mxu0 0.0
        %1989 = vmatpush1.msra.mxu0 %v1944
        %1990 = vmatprep.subr.mxu0 0.0
        %1991 = vmatpush1.msra.mxu0 %v1945
        %1992 = vmatprep.subr.mxu0 0.0
        %1993 = vmatpush1.msra.mxu0 %v1946
        %1994 = vmatprep.subr.mxu0 0.0
        %1995 = vmatpush1.msra.mxu0 %v1947
        %1996 = vmatprep.subr.mxu0 0.0
        %1997 = vmatpush1.msra.mxu0 %v1948
        %1998 = vmatprep.subr.mxu0 0.0
        %1999 = vmatpush1.msra.mxu0 %v1949
        %2000 = vmatprep.subr.mxu0 0.0
        %2001 = vmatpush1.msra.mxu0 %v1950
        %2002 = vmatprep.subr.mxu0 0.0
        %2003 = vmatpush1.msra.mxu0 %v1951
        %2004 = vmatprep.subr.mxu0 0.0
        %2005 = vmatpush1.msra.mxu0 %v1952
        %2006 = vmatprep.subr.mxu0 0.0
        %2007 = vmatpush1.msra.mxu0 %v1953
        %2008 = vmatprep.subr.mxu0 0.0
        %2009 = vmatpush1.msra.mxu0 0.0
        %2010 = vmatprep.subr.mxu0 0.0
        %2011 = vmatpush1.msra.mxu0 0.0
        %2012 = vmatprep.subr.mxu0 0.0
        %2013 = vmatpush1.msra.mxu0 0.0
        %2014 = vmatprep.subr.mxu0 0.0
        %2015 = vmatpush1.msra.mxu0 0.0
        %2016 = vmatprep.subr.mxu0 0.0
        %2017 = vmatpush1.msra.mxu0 0.0
        %2018 = vmatprep.subr.mxu0 0.0
        %2019 = vmatpush1.msra.mxu0 0.0
        %2020 = vmatprep.subr.mxu0 0.0
        %2021 = vmatpush1.msra.mxu0 0.0
        %2022 = vmatprep.subr.mxu0 0.0
        %2023 = vmatpush1.msra.mxu0 0.0
        %2024 = vmatprep.subr.mxu0 0.0
        %2025 = vmatpush1.msra.mxu0 0.0
        %2026 = vmatprep.subr.mxu0 0.0
        %2027 = vmatpush1.msra.mxu0 0.0
        %2028 = vmatprep.subr.mxu0 0.0
        %2029 = vmatpush1.msra.mxu0 0.0
        %2030 = vmatprep.subr.mxu0 0.0
        %2031 = vmatpush1.msra.mxu0 0.0
        %2032 = vmatprep.subr.mxu0 0.0
        %2033 = vmatpush1.msra.mxu0 0.0
        %2034 = vmatprep.subr.mxu0 0.0
        %2035 = vmatpush1.msra.mxu0 0.0
        %2036 = vmatprep.subr.mxu0 0.0
        %2037 = vmatpush1.msra.mxu0 0.0
        %2038 = vmatprep.subr.mxu0 0.0
        %2039 = vmatpush1.msra.mxu0 0.0
        %2040 = vmatprep.mubr.f32.mxu0 0.0
        %2041 = vmatmul.mubr.f32.gmra.mrb[0].mxu0 %v1974
        %v2042 = vpop.f32.mrb[0].mxu0
        %v2043 = vadd.f32 0.0, %v2042
        %v2044 = vpop.f32.mrb[0].mxu0
        %2045 = vdwg.mxu0
        %v2046 = vld [vmem:[#allocation14] sm:$0xff]
        %v2047 = vld [vmem:[#allocation14 + $0x8] sm:$0xff]
        %v2048 = vld [vmem:[#allocation14 + $0x10] sm:$0xff]
        %v2049 = vld [vmem:[#allocation14 + $0x18] sm:$0xff]
        %v2050 = vld [vmem:[#allocation14 + $0x20] sm:$0xff]
        %v2051 = vld [vmem:[#allocation14 + $0x28] sm:$0xff]
        %v2052 = vld [vmem:[#allocation14 + $0x30] sm:$0xff]
        %v2053 = vld [vmem:[#allocation14 + $0x38] sm:$0xff]
        %v2054 = vld [vmem:[#allocation14 + $0x40] sm:$0xff]
        %v2055 = vld [vmem:[#allocation14 + $0x48] sm:$0xff]
        %v2056 = vld [vmem:[#allocation14 + $0x50] sm:$0xff]
        %v2057 = vld [vmem:[#allocation14 + $0x58] sm:$0xff]
        %v2058 = vld [vmem:[#allocation14 + $0x60] sm:$0xff]
        %v2059 = vld [vmem:[#allocation14 + $0x68] sm:$0xff]
        %v2060 = vld [vmem:[#allocation14 + $0x70] sm:$0xff]
        %v2061 = vld [vmem:[#allocation14 + $0x78] sm:$0xff]
        %v2062 = vld [vmem:[#allocation14 + $0x80] sm:$0xff]
        %v2063 = vld [vmem:[#allocation14 + $0x88] sm:$0xff]
        %v2064 = vld [vmem:[#allocation14 + $0x90] sm:$0xff]
        %v2065 = vld [vmem:[#allocation14 + $0x98] sm:$0xff]
        %v2066 = vld [vmem:[#allocation14 + $0xa0] sm:$0xff]
        %v2067 = vld [vmem:[#allocation14 + $0xa8] sm:$0xff]
        %v2068 = vld [vmem:[#allocation14 + $0xb0] sm:$0xff]
        %v2069 = vld [vmem:[#allocation14 + $0xb8] sm:$0xff]
        %v2070 = vld [vmem:[#allocation14 + $0xc0] sm:$0xff]
        %v2071 = vld [vmem:[#allocation14 + $0xc8] sm:$0xff]
        %v2072 = vld [vmem:[#allocation14 + $0xd0] sm:$0xff]
        %v2073 = vld [vmem:[#allocation14 + $0xd8] sm:$0xff]
        %v2074 = vld [vmem:[#allocation14 + $0xe0] sm:$0xff]
        %v2075 = vld [vmem:[#allocation14 + $0xe8] sm:$0xff]
        %v2076 = vld [vmem:[#allocation14 + $0xf0] sm:$0xff]
        %v2077 = vld [vmem:[#allocation14 + $0xf8] sm:$0xff]
        %v2078 = vld [vmem:[%s14] sm:$0x3]
        %v2080 = vlaneseq
        %v2081 = vshrl.u32 %v2080, 7
        %v2082 = vsub.s32 0, %v2081
        %v2083 = vrot.slane %v2078, %v2082
        %v2084 = vlaneseq
        %v2085 = vshrl.u32 %v2084, 7
        %v2086 = vsub.s32 1, %v2085
        %v2087 = vrot.slane %v2078, %v2086
        %v2094 = vcombine.low %v1002, %v1003
        %v2095 = vcombine.low %v1004, %v1005
        %v2097 = vunpack.c.l.s4 1983009808
        %v2098 = vunpack.c.0.s8 %v2097
        %v2099 = vlaneseq
        %v2100 = vshrl.u32 %v2099, 7
        %v2101 = vsub.s32 %v2098, %v2100
        %v2102 = vrot.slane %v2094, %v2101
        %v2104 = vunpack.c.l.s4 1983009808
        %v2105 = vunpack.c.0.s8 %v2104
        %v2106 = vlaneseq
        %v2107 = vshrl.u32 %v2106, 7
        %v2108 = vsub.s32 %v2105, %v2107
        %v2109 = vrot.slane %v2095, %v2108
        %v2110 = vcombine.low %v2102, %v2109
        %2112 = vmatprep.subr.mxu0 %v2047
        %2113 = vmatpush1.msra.mxu0 %v2046
        %2114 = vmatprep.subr.mxu0 %v2049
        %2115 = vmatpush1.msra.mxu0 %v2048
        %2116 = vmatprep.subr.mxu0 %v2051
        %2117 = vmatpush1.msra.mxu0 %v2050
        %2118 = vmatprep.subr.mxu0 %v2053
        %2119 = vmatpush1.msra.mxu0 %v2052
        %2120 = vmatprep.subr.mxu0 %v2055
        %2121 = vmatpush1.msra.mxu0 %v2054
        %2122 = vmatprep.subr.mxu0 %v2057
        %2123 = vmatpush1.msra.mxu0 %v2056
        %2124 = vmatprep.subr.mxu0 %v2059
        %2125 = vmatpush1.msra.mxu0 %v2058
        %2126 = vmatprep.subr.mxu0 %v2061
        %2127 = vmatpush1.msra.mxu0 %v2060
        %2128 = vmatprep.subr.mxu0 %v2063
        %2129 = vmatpush1.msra.mxu0 %v2062
        %2130 = vmatprep.subr.mxu0 %v2065
        %2131 = vmatpush1.msra.mxu0 %v2064
        %2132 = vmatprep.subr.mxu0 %v2067
        %2133 = vmatpush1.msra.mxu0 %v2066
        %2134 = vmatprep.subr.mxu0 %v2069
        %2135 = vmatpush1.msra.mxu0 %v2068
        %2136 = vmatprep.subr.mxu0 %v2071
        %2137 = vmatpush1.msra.mxu0 %v2070
        %2138 = vmatprep.subr.mxu0 %v2073
        %2139 = vmatpush1.msra.mxu0 %v2072
        %2140 = vmatprep.subr.mxu0 %v2075
        %2141 = vmatpush1.msra.mxu0 %v2074
        %2142 = vmatprep.subr.mxu0 %v2077
        %2143 = vmatpush1.msra.mxu0 %v2076
        %2144 = vmatprep.subr.mxu0 0.0
        %2145 = vmatpush1.msra.mxu0 0.0
        %2146 = vmatprep.subr.mxu0 0.0
        %2147 = vmatpush1.msra.mxu0 0.0
        %2148 = vmatprep.subr.mxu0 0.0
        %2149 = vmatpush1.msra.mxu0 0.0
        %2150 = vmatprep.subr.mxu0 0.0
        %2151 = vmatpush1.msra.mxu0 0.0
        %2152 = vmatprep.subr.mxu0 0.0
        %2153 = vmatpush1.msra.mxu0 0.0
        %2154 = vmatprep.subr.mxu0 0.0
        %2155 = vmatpush1.msra.mxu0 0.0
        %2156 = vmatprep.subr.mxu0 0.0
        %2157 = vmatpush1.msra.mxu0 0.0
        %2158 = vmatprep.subr.mxu0 0.0
        %2159 = vmatpush1.msra.mxu0 0.0
        %2160 = vmatprep.subr.mxu0 0.0
        %2161 = vmatpush1.msra.mxu0 0.0
        %2162 = vmatprep.subr.mxu0 0.0
        %2163 = vmatpush1.msra.mxu0 0.0
        %2164 = vmatprep.subr.mxu0 0.0
        %2165 = vmatpush1.msra.mxu0 0.0
        %2166 = vmatprep.subr.mxu0 0.0
        %2167 = vmatpush1.msra.mxu0 0.0
        %2168 = vmatprep.subr.mxu0 0.0
        %2169 = vmatpush1.msra.mxu0 0.0
        %2170 = vmatprep.subr.mxu0 0.0
        %2171 = vmatpush1.msra.mxu0 0.0
        %2172 = vmatprep.subr.mxu0 0.0
        %2173 = vmatpush1.msra.mxu0 0.0
        %2174 = vmatprep.subr.mxu0 0.0
        %2175 = vmatpush1.msra.mxu0 0.0
        %2176 = vmatprep.mubr.f32.mxu0 0.0
        %2177 = vmatmul.mubr.f32.gmra.mrb[0].mxu0 %v2110
        %v2178 = vpop.f32.mrb[0].mxu0
        %v2179 = vadd.f32 %v2083, %v2178
        %v2180 = vpop.f32.mrb[0].mxu0
        %v2181 = vadd.f32 %v2087, %v2180
        %2182 = vdwg.mxu0
        %v2183 = vmul.f32 %v2179, 0.5
        %v2184 = vmul.f32 %v2181, 0.5
        %v2185 = vmul.f32 %v2179, 0.70710677
        %v2186 = vmul.f32 %v2181, 0.70710677
        %v2187 = verf.f32.pop %v2185
        %v2188 = verf.f32.pop %v2186
        %v2189 = vadd.f32 %v2187, 1.0
        %v2190 = vadd.f32 %v2188, 1.0
        %v2191 = vmul.f32 %v2183, %v2189
        %v2192 = vmul.f32 %v2184, %v2190
        %v2193 = vld [vmem:[#allocation16] sm:$0xff]
        %v2194 = vld [vmem:[#allocation16 + $0x8] sm:$0xff]
        %v2195 = vld [vmem:[#allocation16 + $0x10] sm:$0xff]
        %v2196 = vld [vmem:[#allocation16 + $0x18] sm:$0xff]
        %v2197 = vld [vmem:[#allocation16 + $0x20] sm:$0xff]
        %v2198 = vld [vmem:[#allocation16 + $0x28] sm:$0xff]
        %v2199 = vld [vmem:[#allocation16 + $0x30] sm:$0xff]
        %v2200 = vld [vmem:[#allocation16 + $0x38] sm:$0xff]
        %v2201 = vld [vmem:[#allocation16 + $0x40] sm:$0xff]
        %v2202 = vld [vmem:[#allocation16 + $0x48] sm:$0xff]
        %v2203 = vld [vmem:[#allocation16 + $0x50] sm:$0xff]
        %v2204 = vld [vmem:[#allocation16 + $0x58] sm:$0xff]
        %v2205 = vld [vmem:[#allocation16 + $0x60] sm:$0xff]
        %v2206 = vld [vmem:[#allocation16 + $0x68] sm:$0xff]
        %v2207 = vld [vmem:[#allocation16 + $0x70] sm:$0xff]
        %v2208 = vld [vmem:[#allocation16 + $0x78] sm:$0xff]
        %v2209 = vld [vmem:[#allocation16 + $0x80] sm:$0xff]
        %v2210 = vld [vmem:[#allocation16 + $0x88] sm:$0xff]
        %v2211 = vld [vmem:[#allocation16 + $0x90] sm:$0xff]
        %v2212 = vld [vmem:[#allocation16 + $0x98] sm:$0xff]
        %v2213 = vld [vmem:[#allocation16 + $0xa0] sm:$0xff]
        %v2214 = vld [vmem:[#allocation16 + $0xa8] sm:$0xff]
        %v2215 = vld [vmem:[#allocation16 + $0xb0] sm:$0xff]
        %v2216 = vld [vmem:[#allocation16 + $0xb8] sm:$0xff]
        %v2217 = vld [vmem:[#allocation16 + $0xc0] sm:$0xff]
        %v2218 = vld [vmem:[#allocation16 + $0xc8] sm:$0xff]
        %v2219 = vld [vmem:[#allocation16 + $0xd0] sm:$0xff]
        %v2220 = vld [vmem:[#allocation16 + $0xd8] sm:$0xff]
        %v2221 = vld [vmem:[#allocation16 + $0xe0] sm:$0xff]
        %v2222 = vld [vmem:[#allocation16 + $0xe8] sm:$0xff]
        %v2223 = vld [vmem:[#allocation16 + $0xf0] sm:$0xff]
        %v2224 = vld [vmem:[#allocation16 + $0xf8] sm:$0xff]
        %2225 = vmatprep.subr.mxu0 0.0
        %2226 = vmatpush1.msra.mxu0 %v2193
        %2227 = vmatprep.subr.mxu0 0.0
        %2228 = vmatpush1.msra.mxu0 %v2194
        %2229 = vmatprep.subr.mxu0 0.0
        %2230 = vmatpush1.msra.mxu0 %v2195
        %2231 = vmatprep.subr.mxu0 0.0
        %2232 = vmatpush1.msra.mxu0 %v2196
        %2233 = vmatprep.subr.mxu0 0.0
        %2234 = vmatpush1.msra.mxu0 %v2197
        %2235 = vmatprep.subr.mxu0 0.0
        %2236 = vmatpush1.msra.mxu0 %v2198
        %2237 = vmatprep.subr.mxu0 0.0
        %2238 = vmatpush1.msra.mxu0 %v2199
        %2239 = vmatprep.subr.mxu0 0.0
        %2240 = vmatpush1.msra.mxu0 %v2200
        %2241 = vmatprep.subr.mxu0 0.0
        %2242 = vmatpush1.msra.mxu0 %v2201
        %2243 = vmatprep.subr.mxu0 0.0
        %2244 = vmatpush1.msra.mxu0 %v2202
        %2245 = vmatprep.subr.mxu0 0.0
        %2246 = vmatpush1.msra.mxu0 %v2203
        %2247 = vmatprep.subr.mxu0 0.0
        %2248 = vmatpush1.msra.mxu0 %v2204
        %2249 = vmatprep.subr.mxu0 0.0
        %2250 = vmatpush1.msra.mxu0 %v2205
        %2251 = vmatprep.subr.mxu0 0.0
        %2252 = vmatpush1.msra.mxu0 %v2206
        %2253 = vmatprep.subr.mxu0 0.0
        %2254 = vmatpush1.msra.mxu0 %v2207
        %2255 = vmatprep.subr.mxu0 0.0
        %2256 = vmatpush1.msra.mxu0 %v2208
        %2257 = vmatprep.subr.mxu0 0.0
        %2258 = vmatpush1.msra.mxu0 %v2209
        %2259 = vmatprep.subr.mxu0 0.0
        %2260 = vmatpush1.msra.mxu0 %v2210
        %2261 = vmatprep.subr.mxu0 0.0
        %2262 = vmatpush1.msra.mxu0 %v2211
        %2263 = vmatprep.subr.mxu0 0.0
        %2264 = vmatpush1.msra.mxu0 %v2212
        %2265 = vmatprep.subr.mxu0 0.0
        %2266 = vmatpush1.msra.mxu0 %v2213
        %2267 = vmatprep.subr.mxu0 0.0
        %2268 = vmatpush1.msra.mxu0 %v2214
        %2269 = vmatprep.subr.mxu0 0.0
        %2270 = vmatpush1.msra.mxu0 %v2215
        %2271 = vmatprep.subr.mxu0 0.0
        %2272 = vmatpush1.msra.mxu0 %v2216
        %2273 = vmatprep.subr.mxu0 0.0
        %2274 = vmatpush1.msra.mxu0 %v2217
        %2275 = vmatprep.subr.mxu0 0.0
        %2276 = vmatpush1.msra.mxu0 %v2218
        %2277 = vmatprep.subr.mxu0 0.0
        %2278 = vmatpush1.msra.mxu0 %v2219
        %2279 = vmatprep.subr.mxu0 0.0
        %2280 = vmatpush1.msra.mxu0 %v2220
        %2281 = vmatprep.subr.mxu0 0.0
        %2282 = vmatpush1.msra.mxu0 %v2221
        %2283 = vmatprep.subr.mxu0 0.0
        %2284 = vmatpush1.msra.mxu0 %v2222
        %2285 = vmatprep.subr.mxu0 0.0
        %2286 = vmatpush1.msra.mxu0 %v2223
        %2287 = vmatprep.subr.mxu0 0.0
        %2288 = vmatpush1.msra.mxu0 %v2224
        %2289 = vmatprep.mubr.f32.mxu0 %v2192
        %2290 = vmatmul.mubr.f32.gmra.mrb[0].mxu0 %v2191
        %v2291 = vpop.f32.mrb[0].mxu0
        %v2292 = vadd.f32 0.0, %v2291
        %v2293 = vpop.f32.mrb[0].mxu0
        %2294 = vdwg.mxu0
        %v2296 = vcombine.high %v2043, %v2043
        %v2298 = vunpack.c.l.s4 1983009808
        %v2299 = vunpack.c.0.s8 %v2298
        %v2300 = vlaneseq
        %v2301 = vshrl.u32 %v2300, 7
        %v2302 = vsub.s32 %v2299, %v2301
        %v2303 = vrot.slane %v2043, %v2302
        %v2305 = vunpack.c.l.s4 1983009808
        %v2306 = vunpack.c.0.s8 %v2305
        %v2307 = vlaneseq
        %v2308 = vshrl.u32 %v2307, 7
        %v2309 = vsub.s32 %v2306, %v2308
        %v2310 = vrot.slane %v2296, %v2309
        %v2311 = vcombine.high %v2303, %v2303
        %v2312 = vcombine.high %v2310, %v2310
        %v2317 = vadd.f32 %v710, %v2303
        %v2318 = vadd.f32 %v711, %v2311
        %v2319 = vadd.f32 %v712, %v2310
        %v2320 = vadd.f32 %v713, %v2312
        %v2322 = vcombine.high %v2292, %v2292
        %v2324 = vunpack.c.l.s4 1983009808
        %v2325 = vunpack.c.0.s8 %v2324
        %v2326 = vlaneseq
        %v2327 = vshrl.u32 %v2326, 7
        %v2328 = vsub.s32 %v2325, %v2327
        %v2329 = vrot.slane %v2292, %v2328
        %v2331 = vunpack.c.l.s4 1983009808
        %v2332 = vunpack.c.0.s8 %v2331
        %v2333 = vlaneseq
        %v2334 = vshrl.u32 %v2333, 7
        %v2335 = vsub.s32 %v2332, %v2334
        %v2336 = vrot.slane %v2322, %v2335
        %v2337 = vcombine.high %v2329, %v2329
        %v2338 = vcombine.high %v2336, %v2336
        %v2343 = vadd.f32 %v2317, %v2329
        %v2344 = vadd.f32 %v2318, %v2337
        %v2345 = vadd.f32 %v2319, %v2336
        %v2346 = vadd.f32 %v2320, %v2338
        %v2347 = vld [vmem:[%s16] sm:$0x1]
        %v2349 = vlaneseq
        %v2350 = vshrl.u32 %v2349, 7
        %v2351 = vsub.s32 0, %v2350
        %v2352 = vrot.slane %v2347, %v2351
        %v2353 = vcombine.high %v2352, %v2352
        %v2355 = vunpack.c.l.s4 1983009808
        %v2356 = vunpack.c.0.s8 %v2355
        %v2357 = vlaneseq
        %v2358 = vshrl.u32 %v2357, 7
        %v2359 = vsub.s32 %v2356, %v2358
        %v2360 = vrot.slane %v2352, %v2359
        %v2362 = vunpack.c.l.s4 1983009808
        %v2363 = vunpack.c.0.s8 %v2362
        %v2364 = vlaneseq
        %v2365 = vshrl.u32 %v2364, 7
        %v2366 = vsub.s32 %v2363, %v2365
        %v2367 = vrot.slane %v2353, %v2366
        %v2368 = vcombine.high %v2360, %v2360
        %v2369 = vcombine.high %v2367, %v2367
        %v2374 = vadd.f32 %v2343, %v2360
        %v2375 = vadd.f32 %v2344, %v2368
        %v2376 = vadd.f32 %v2345, %v2367
        %v2377 = vadd.f32 %v2346, %v2369
        %2378 = vst [vmem:[%s706] sm:$0x3] %v2374
        %2379 = vst [vmem:[%s706 + $0x2] sm:$0x3] %v2375
        %2380 = vst [vmem:[%s706 + $0x4] sm:$0x3] %v2376
        %2381 = vst [vmem:[%s706 + $0x6] sm:$0x3] %v2377
        %s2382 = sand.u32 %s415, 1
        %s2383 = scalar_lea.sflag [#allocation4], %s2382
        %s2384 = sand.u32 %s415, 1
        %s2385 = smul.addr %s2384, 8
        %s2386 = scalar_lea.vmem [#allocation17], %s2385
        // Predicated region
        $region125: #{tpu_custom_call.1} parent=87 // pred_check
          %p2387 = pneg %p425
        $region126: #{tpu_custom_call.1} parent=87 // pred_check_branch
          %2389 = sbr.rel (%p2387) target = $region128
        $region127: #{tpu_custom_call.1} parent=87 // pred_region
          %s2390 = smul.u32 4, %s40
          %s2392 = ssub.s32 128, 128
          %2393 = vsyncadd %s2383, %s2392
          %s2394 = smul.addr %s2390, 32
          %s2395 = scalar_lea.hbm %s17, %s2394
          %s2396 = sshll.u32 %s2386, 4
          %s2397 = int_to_ptr.vmem [resolvable:$true] %s2396
          %2402 = dma.vmem_to_hbm [thread:$0]  %s2397, 128, %s2395, %s2383, 32, 32, 2
        $region128: #{tpu_custom_call.1} parent=87 // pred_fallthru
          _
      $region88: #{tpu_custom_call.1} parent=5 // pred_fallthru
        _
      %p2403 = scmp.le.s32.totalorder 2, %s35
      // Predicated region
      $region129: #{tpu_custom_call.1} parent=5 // pred_check
        %p2404 = pneg %p2403
      $region130: #{tpu_custom_call.1} parent=5 // pred_check_branch
        %2406 = sbr.rel (%p2404) target = $region132
      $region131: #{tpu_custom_call.1} parent=5 // pred_region
        %s2407 = ssub.s32 %s35, 2
        // Predicated region
        $region133: #{tpu_custom_call.1} parent=131 // pred_check
          %p2408 = pneg %p431
        $region134: #{tpu_custom_call.1} parent=131 // pred_check_branch
          %2410 = sbr.rel (%p2408) target = $region136
        $region135: #{tpu_custom_call.1} parent=131 // pred_region
          %s2411 = sand.u32 %s416, 1
          %s2412 = scalar_lea.sflag [#allocation4], %s2411
          %s2413 = sand.u32 %s416, 1
          %s2414 = smul.addr %s2413, 8
          %s2415 = scalar_lea.vmem [#allocation17], %s2414
          %2416 = dma.done %s2412, 128
        $region136: #{tpu_custom_call.1} parent=131 // pred_fallthru
          _
      $region132: #{tpu_custom_call.1} parent=5 // pred_fallthru
        _
    $region6: #{tpu_custom_call.1} parent=1 // loop_footer
      %s39 = sadd.s32 1, %s35
    $region7: #{tpu_custom_call.1} parent=1 // loop_footer_branch
      %34 = sbr.rel target = $region3
    $region8: #{tpu_custom_call.1} parent=1 // loop_exit
      _
    %2417 = vsyncpa [#allocation3], 1
    %s2418 = scalar_lea.sflag [#allocation3], 1
    %2419 = vsyncpa %s2418, 1
    %2420 = vsyncpa [#allocation6], 1
    %s2421 = scalar_lea.sflag [#allocation6], 1
    %2422 = vsyncpa %s2421, 1
    %2423 = vsyncpa [#allocation9], 1
    %2424 = vsyncpa [#allocation12], 1
    %2425 = vsyncpa [#allocation15], 1
    %2426 = vsyncpa [#allocation4], 1
    %s2427 = scalar_lea.sflag [#allocation4], 1
    %2428 = vsyncpa %s2427, 1

</llo_original>
